<compile_context>
chip_gen: v6e
topology: v6e:2x2x1
jax: 0.10.0
libtpu: 0.0.40
codegen_flags: <defaults>
</compile_context>

<pallas_src>
import functools

import jax
import jax.numpy as jnp
from jax.experimental import pallas as pl
from jax.experimental.pallas import tpu as pltpu

# ----------------------------- hyper-params ---------------------------------
NUM_FEATURES = 8      # args.num_features
NHID         = 32     # args.nhid
NUM_CLASSES  = 4      # args.num_classes
K            = 3      # args.K
ALPHA        = 0.1    # SSGConv teleport coefficient
DROPOUT_P    = 0.5    # args.dropout_ratio (inference -> identity)

LANE    = 128         # vreg lane width
SUBLANE = 8           # f32 sublane width

FAST_PATH_VMEM_BUDGET_BYTES = 10 << 20   # fully-resident single-kernel path
CUR_RESIDENT_BUDGET_BYTES   = 8 << 20    # resident cur block (counted x2 buffers)


def _round_up(v, m):
    return ((v + m - 1) // m) * m


def _buffered_spec(block_shape, index_map, buffers):
    """BlockSpec requesting `buffers`-deep pipelining; plain BlockSpec fallback
    if this jax build does not expose pipeline_mode / pl.Buffered."""
    try:
        return pl.BlockSpec(block_shape, index_map,
                            pipeline_mode=pl.Buffered(buffers))
    except Exception:  # pragma: no cover - older jax signature
        return pl.BlockSpec(block_shape, index_map)


def _masked_log_softmax(logits, num_classes):
    """log_softmax over the lane axis with padded classes masked out (f32)."""
    col = jax.lax.broadcasted_iota(jnp.int32, logits.shape, 1)
    logits = jnp.where(col < num_classes, logits, -1e30)
    m = jnp.max(logits, axis=-1, keepdims=True)
    z = logits - m
    return z - jnp.log(jnp.sum(jnp.exp(z), axis=-1, keepdims=True))


# --------------- kernel 0: fully-resident small-graph fast path --------------
def _fused_small_kernel(s_ref, x_ref, p_ref, wconv_ref, bconv_ref, w1_ref,
                        b1_ref, w2_ref, b2_ref, out_ref, *, k_hops, alpha,
                        num_classes):
    """grid=(): S, x, pool and all weights are VMEM-resident.  Runs all K
    propagation hops, the SSGConv linear, add-pool, MLP and log_softmax in a
    single kernel (no per-hop launches / HBM roundtrips)."""
    x = x_ref[...]                               # f32 [np, fp]
    h = alpha * x                                # f32 running accumulator
    cur = x.astype(jnp.bfloat16)                 # bf16 MXU operand
    coef = (1.0 - alpha) / float(k_hops)
    for _ in range(k_hops):                      # K is small & static: unrolled
        new = jnp.dot(s_ref[...], cur, preferred_element_type=jnp.float32)
        h = h + coef * new
        cur = new.astype(jnp.bfloat16)
    hl = jnp.dot(h.astype(jnp.bfloat16), wconv_ref[...],
                 preferred_element_type=jnp.float32) + bconv_ref[...]
    g = jnp.dot(p_ref[...], hl.astype(jnp.bfloat16),
                preferred_element_type=jnp.float32)
    g = jnp.dot(g.astype(jnp.bfloat16), w1_ref[...],
                preferred_element_type=jnp.float32) + b1_ref[...]
    g = jnp.maximum(g, 0.0)
    # dropout(p=DROPOUT_P): eval mode -> identity.
    # TODO(synk): training-mode dropout (pltpu.prng_seed / prng_random_bits
    # mask) is not wired in.
    logits = jnp.dot(g.astype(jnp.bfloat16), w2_ref[...],
                     preferred_element_type=jnp.float32) + b2_ref[...]
    out_ref[...] = _masked_log_softmax(logits, num_classes)


# --------------------- kernel 1: one SSGC propagation hop --------------------
def _prop_hop_kernel(s_ref, cur_ref, h_ref, cur_out_ref, h_out_ref, acc_ref,
                     *, coef, tk, cur_resident):
    """grid = (row tiles i, contraction tiles k).  Per row tile:
         new     = S @ cur          (bf16 operands, f32 accumulation)
         h_out   = h + coef * new   (f32 elementwise)
         cur_out = bf16(new)        (MXU operand for the next hop)
       If cur_resident, cur_ref holds the full [np, fp] operand (fetched once
       per hop) and is sliced here; otherwise it is the (tk, fp) tile."""
    k = pl.program_id(1)

    @pl.when(k == 0)
    def _():
        acc_ref[...] = jnp.zeros_like(acc_ref)

    if cur_resident:
        off = pl.multiple_of(k * tk, tk)
        cur_blk = cur_ref[pl.ds(off, tk), :]
    else:
        cur_blk = cur_ref[...]

    acc_ref[...] += jnp.dot(s_ref[...], cur_blk,
                            preferred_element_type=jnp.float32)

    @pl.when(k == pl.num_programs(1) - 1)
    def _():
        new = acc_ref[...]
        cur_out_ref[...] = new.astype(cur_out_ref.dtype)
        h_out_ref[...] = h_ref[...] + coef * new


# --------- kernel 2: fused SSGConv-linear + add-pool + MLP + log_softmax -----
def _head_kernel(p_ref, h_ref, wconv_ref, bconv_ref, w1_ref, b1_ref,
                 w2_ref, b2_ref, out_ref, acc_ref, *, num_classes):
    """grid = (node tiles k,).  Per tile: cast the f32 h tile to bf16 in VMEM,
    project through the SSGConv linear (the [tile, nhid] result never touches
    HBM) and accumulate its pooled contribution.  Last tile: lin1 + relu +
    lin2 + log_softmax with padded classes masked out."""
    k = pl.program_id(0)

    @pl.when(k == 0)
    def _():
        acc_ref[...] = jnp.zeros_like(acc_ref)

    hl = jnp.dot(h_ref[...].astype(jnp.bfloat16), wconv_ref[...],
                 preferred_element_type=jnp.float32) + bconv_ref[...]
    acc_ref[...] += jnp.dot(p_ref[...], hl.astype(jnp.bfloat16),
                            preferred_element_type=jnp.float32)

    @pl.when(k == pl.num_programs(0) - 1)
    def _():
        g = acc_ref[...]                                               # [Gp, Hp]
        g = jnp.dot(g.astype(jnp.bfloat16), w1_ref[...],
                    preferred_element_type=jnp.float32) + b1_ref[...]
        g = jnp.maximum(g, 0.0)
        # dropout(p=DROPOUT_P): eval mode -> identity.
        # TODO(synk): training-mode dropout (pltpu.prng_* mask) not wired in.
        logits = jnp.dot(g.astype(jnp.bfloat16), w2_ref[...],
                         preferred_element_type=jnp.float32) + b2_ref[...]
        out_ref[...] = _masked_log_softmax(logits, num_classes)


# ------------------------------ call helpers ----------------------------------
def _fused_small_call(s_bf16, x_p, pool_bf16, weights, *, k_hops, alpha, n_cls,
                      gp, cp):
    np_, fp = x_p.shape
    hp = weights[0].shape[1]
    flops = (2 * k_hops * np_ * np_ * fp + 2 * np_ * fp * hp
             + 2 * gp * np_ * hp + 2 * gp * hp * hp + 2 * gp * hp * cp)
    bytes_acc = (np_ * np_ * 2 + np_ * fp * 4 + gp * np_ * 2
                 + (fp * hp + hp * hp + hp * cp) * 2
                 + (2 * hp + cp) * 4 + gp * cp * 4)
    return pl.pallas_call(
        functools.partial(_fused_small_kernel, k_hops=k_hops, alpha=alpha,
                          num_classes=n_cls),
        out_shape=jax.ShapeDtypeStruct((gp, cp), jnp.float32),
        cost_estimate=pl.CostEstimate(flops=flops, transcendentals=gp * cp,
                                      bytes_accessed=bytes_acc),
    )(s_bf16, x_p, pool_bf16, *weights)


def _tiled_call(s_bf16, x_p, pool_bf16, weights, *, k_hops, alpha, n_cls, tile,
                gp, cp, cur_resident_budget_bytes):
    np_, fp = x_p.shape
    wconv_bf16, bconv_p, w1_bf16, b1_p, w2_bf16, b2_p = weights
    hp = wconv_bf16.shape[1]
    tm = tk = tile
    grid = (np_ // tm, np_ // tk)

    # Resident cur: index_map is constant so it is DMA'd once per hop instead
    # of once per row tile (previously up to 2x total HBM traffic at tile=128).
    # Budget counts 2 pipeline buffers so total prop VMEM stays well inside the
    # scoped defaults on v5e (16 MiB) and v6e/v7x (32 MiB).
    cur_resident = (2 * np_ * fp * 2) <= cur_resident_budget_bytes
    if cur_resident:
        cur_spec = pl.BlockSpec((np_, fp), lambda i, k: (0, 0))
        cur_bytes = np_ * fp * 2
    else:
        cur_spec = pl.BlockSpec((tk, fp), lambda i, k: (k, 0))
        cur_bytes = grid[0] * np_ * fp * 2

    coef = (1.0 - alpha) / float(k_hops)
    h = alpha * x_p                          # f32 running accumulator
    cur = x_p.astype(jnp.bfloat16)           # bf16 MXU operand

    prop = pl.pallas_call(
        functools.partial(_prop_hop_kernel, coef=coef, tk=tk,
                          cur_resident=cur_resident),
        out_shape=(jax.ShapeDtypeStruct((np_, fp), jnp.bfloat16),   # next cur
                   jax.ShapeDtypeStruct((np_, fp), jnp.float32)),   # updated h
        grid_spec=pltpu.PrefetchScalarGridSpec(
            num_scalar_prefetch=0,
            grid=grid,
            in_specs=[_buffered_spec((tm, tk), lambda i, k: (i, k), 3),  # S
                      cur_spec,                                          # cur
                      pl.BlockSpec((tm, fp), lambda i, k: (i, 0))],      # h
            out_specs=[pl.BlockSpec((tm, fp), lambda i, k: (i, 0)),
                       pl.BlockSpec((tm, fp), lambda i, k: (i, 0))],
            scratch_shapes=[pltpu.VMEM((tm, fp), jnp.float32)]),
        compiler_params=pltpu.CompilerParams(
            dimension_semantics=("parallel", "arbitrary")),
        cost_estimate=pl.CostEstimate(
            flops=2 * np_ * np_ * fp,
            transcendentals=0,
            bytes_accessed=(np_ * np_ * 2          # S stream
                            + cur_bytes            # cur reads (actual traffic)
                            + np_ * fp * 4         # h read
                            + np_ * fp * 2         # cur_out write
                            + np_ * fp * 4)),      # h_out write
    )
    for _ in range(k_hops):
        cur, h = prop(s_bf16, cur, h)

    # Head consumes f32 h directly (cast to bf16 per tile inside the kernel),
    # so there is no standalone h.astype(bf16) HBM pass.
    kt = np_ // tk
    head = pl.pallas_call(
        functools.partial(_head_kernel, num_classes=n_cls),
        out_shape=jax.ShapeDtypeStruct((gp, cp), jnp.float32),
        grid_spec=pltpu.PrefetchScalarGridSpec(
            num_scalar_prefetch=0,
            grid=(kt,),
            in_specs=[pl.BlockSpec((gp, tk), lambda k: (0, k)),   # pooling tile
                      pl.BlockSpec((tk, fp), lambda k: (k, 0)),   # h tile (f32)
                      pl.BlockSpec((fp, hp), lambda k: (0, 0)),   # Wconv bf16
                      pl.BlockSpec((1, hp),  lambda k: (0, 0)),   # bconv f32
                      pl.BlockSpec((hp, hp), lambda k: (0, 0)),   # W1 bf16
                      pl.BlockSpec((1, hp),  lambda k: (0, 0)),   # b1 f32
                      pl.BlockSpec((hp, cp), lambda k: (0, 0)),   # W2 bf16
                      pl.BlockSpec((1, cp),  lambda k: (0, 0))],  # b2 f32
            out_specs=pl.BlockSpec((gp, cp), lambda k: (0, 0)),
            scratch_shapes=[pltpu.VMEM((gp, hp), jnp.float32)]),
        compiler_params=pltpu.CompilerParams(
            dimension_semantics=("arbitrary",)),
        cost_estimate=pl.CostEstimate(
            flops=(2 * np_ * fp * hp + 2 * gp * np_ * hp
                   + 2 * gp * hp * hp + 2 * gp * hp * cp),
            transcendentals=gp * cp,
            bytes_accessed=(gp * np_ * 2 + np_ * fp * 4
                            + (fp * hp + hp * hp + hp * cp) * 2
                            + (2 * hp + cp) * 4 + gp * cp * 4)),
    )
    return head(pool_bf16, h, wconv_bf16, bconv_p, w1_bf16, b1_p, w2_bf16, b2_p)


# ------------------------------ wrapper --------------------------------------
def net_ssgc_forward(x, edge_index, batch, num_graphs, params, *, k_hops=K,
                     alpha=ALPHA, tile=512, force_tiled=False,
                     cur_resident_budget_bytes=CUR_RESIDENT_BUDGET_BYTES):
    """Graph glue (dense normalized adjacency, pooling matrix, padding) in plain
    JAX; all matmuls / activations / softmax inside Pallas kernels."""
    assert tile % LANE == 0
    n, f = x.shape
    wconv, bconv, w1, b1, w2, b2 = params
    nhid = w1.shape[0]
    n_cls = w2.shape[1]

    # --- gcn_norm with self-loops: S[dst, src] = d^-1/2[dst] * d^-1/2[src] ---
    # TODO(synk): the dense S / P build is O(N^2) XLA work outside the kernels;
    # cache across calls for static graphs, or stream a block-sparse S via
    # scalar-prefetch index maps for large graphs.
    loop = jnp.arange(n, dtype=edge_index.dtype)
    src = jnp.concatenate([edge_index[0], loop])
    dst = jnp.concatenate([edge_index[1], loop])
    adj = jnp.zeros((n, n), jnp.float32).at[dst, src].add(1.0)
    deg = jnp.sum(adj, axis=1)
    dinv = jnp.where(deg > 0, jax.lax.rsqrt(deg), 0.0)
    s = dinv[:, None] * adj * dinv[None, :]

    # --- TPU-friendly padded shapes (lane-dense everywhere) -------------------
    fp = _round_up(f, LANE)                  # feature lanes
    hp = _round_up(nhid, LANE)               # hidden lanes
    cp = _round_up(n_cls, LANE)              # class lanes (lane-dense store)
    gp = _round_up(num_graphs, SUBLANE)      # graph rows

    np_small = _round_up(n, LANE)
    fast_bytes = (np_small * np_small * 2                # resident S (bf16)
                  + np_small * fp * (4 + 2 + 4 + 4)      # x, cur, h, new
                  + gp * np_small * 2                    # pooling matrix
                  + (fp * hp + hp * hp + hp * cp) * 2)   # weights
    use_fast = (not force_tiled) and fast_bytes <= FAST_PATH_VMEM_BUDGET_BYTES
    np_ = np_small if use_fast else _round_up(n, tile)   # node dim

    s_bf16 = jnp.zeros((np_, np_), jnp.bfloat16).at[:n, :n].set(
        s.astype(jnp.bfloat16))
    x_p = jnp.zeros((np_, fp), jnp.float32).at[:n, :f].set(x.astype(jnp.float32))

    pool = (batch[None, :] == jnp.arange(num_graphs, dtype=batch.dtype)[:, None])
    pool_bf16 = jnp.zeros((gp, np_), jnp.bfloat16).at[:num_graphs, :n].set(
        pool.astype(jnp.bfloat16))

    wconv_bf16 = jnp.zeros((fp, hp), jnp.bfloat16).at[:f, :nhid].set(
        wconv.astype(jnp.bfloat16))
    bconv_p = jnp.zeros((1, hp), jnp.float32).at[:, :nhid].set(bconv.reshape(1, -1))
    w1_bf16 = jnp.zeros((hp, hp), jnp.bfloat16).at[:nhid, :nhid].set(
        w1.astype(jnp.bfloat16))
    b1_p = jnp.zeros((1, hp), jnp.float32).at[:, :nhid].set(b1.reshape(1, -1))
    w2_bf16 = jnp.zeros((hp, cp), jnp.bfloat16).at[:nhid, :n_cls].set(
        w2.astype(jnp.bfloat16))
    b2_p = jnp.zeros((1, cp), jnp.float32).at[:, :n_cls].set(b2.reshape(1, -1))
    weights = (wconv_bf16, bconv_p, w1_bf16, b1_p, w2_bf16, b2_p)

    if use_fast:
        out_p = _fused_small_call(s_bf16, x_p, pool_bf16, weights,
                                  k_hops=k_hops, alpha=alpha, n_cls=n_cls,
                                  gp=gp, cp=cp)
    else:
        out_p = _tiled_call(s_bf16, x_p, pool_bf16, weights, k_hops=k_hops,
                            alpha=alpha, n_cls=n_cls, tile=tile, gp=gp, cp=cp,
                            cur_resident_budget_bytes=cur_resident_budget_bytes)
    return out_p[:num_graphs, :n_cls]


def init_params(key):
    k = jax.random.split(key, 6)
    def lin(kk, fan_in, fan_out):
        bound = 1.0 / jnp.sqrt(fan_in)
        w = jax.random.uniform(kk[0], (fan_in, fan_out), jnp.float32, -bound, bound)
        b = jax.random.uniform(kk[1], (1, fan_out), jnp.float32, -bound, bound)
        return w, b
    wconv, bconv = lin(k[0:2], NUM_FEATURES, NHID)
    w1, b1 = lin(k[2:4], NHID, NHID)
    w2, b2 = lin(k[4:6], NHID, NUM_CLASSES)
    return (wconv, bconv, w1, b1, w2, b2)


# ------------------------------ reference ------------------------------------
def _reference(x, edge_index, batch, num_graphs, params, *, k_hops=K, alpha=ALPHA):
    """Module-order reference (conv -> pool -> lin1 -> relu -> lin2 ->
    log_softmax) using the same bf16 matmul-operand quantization as the kernels
    (f32 accumulation), so the comparison only has to absorb f32 re-association
    / padding differences."""
    n = x.shape[0]
    loop = jnp.arange(n, dtype=edge_index.dtype)
    src = jnp.concatenate([edge_index[0], loop])
    dst = jnp.concatenate([edge_index[1], loop])
    adj = jnp.zeros((n, n), jnp.float32).at[dst, src].add(1.0)
    deg = jnp.sum(adj, axis=1)
    dinv = jnp.where(deg > 0, jax.lax.rsqrt(deg), 0.0)
    s_bf = (dinv[:, None] * adj * dinv[None, :]).astype(jnp.bfloat16)

    wconv, bconv, w1, b1, w2, b2 = params
    h = alpha * x
    cur = x
    coef = (1.0 - alpha) / float(k_hops)
    for _ in range(k_hops):
        cur = jnp.dot(s_bf, cur.astype(jnp.bfloat16),
                      preferred_element_type=jnp.float32)
        h = h + coef * cur
    hl = jnp.dot(h.astype(jnp.bfloat16), wconv.astype(jnp.bfloat16),
                 preferred_element_type=jnp.float32) + bconv
    pool = (batch[None, :] == jnp.arange(num_graphs, dtype=batch.dtype)[:, None]
            ).astype(jnp.bfloat16)
    g = jnp.dot(pool, hl.astype(jnp.bfloat16), preferred_element_type=jnp.float32)
    g = jnp.maximum(jnp.dot(g.astype(jnp.bfloat16), w1.astype(jnp.bfloat16),
                            preferred_element_type=jnp.float32) + b1, 0.0)
    logits = jnp.dot(g.astype(jnp.bfloat16), w2.astype(jnp.bfloat16),
                     preferred_element_type=jnp.float32) + b2
    return jax.nn.log_softmax(logits, axis=-1)


# --------------------------------- main ---------------------------------------
if __name__ == "__main__":
    key = jax.random.PRNGKey(0)
    kx, ke, kp = jax.random.split(key, 3)

    # N=224 is not a multiple of any tile so padding is exercised.
    N_NODES, N_EDGES, N_GRAPHS = 224, 800, 4

    x = jax.random.normal(kx, (N_NODES, NUM_FEATURES), jnp.float32)
    edge_index = jax.random.randint(ke, (2, N_EDGES), 0, N_NODES, jnp.int32)
    batch = jnp.repeat(jnp.arange(N_GRAPHS, dtype=jnp.int32),
                       N_NODES // N_GRAPHS)

    params = init_params(kp)
    ref = _reference(x, edge_index, batch, N_GRAPHS, params)

    # 1) Default: small-graph fast path (single fused, fully-resident kernel).
    out_fast = jax.block_until_ready(
        net_ssgc_forward(x, edge_index, batch, N_GRAPHS, params))
    # 2) Tiled path with resident cur (tile=128 -> (2,2) prop grid, so the
    #    accumulator and the in-kernel pl.ds slice of cur are exercised).
    out_tiled = jax.block_until_ready(
        net_ssgc_forward(x, edge_index, batch, N_GRAPHS, params,
                         force_tiled=True, tile=128))
    # 3) Tiled path with the streaming-cur fallback BlockSpec.
    out_stream = jax.block_until_ready(
        net_ssgc_forward(x, edge_index, batch, N_GRAPHS, params,
                         force_tiled=True, tile=128,
                         cur_resident_budget_bytes=0))

    # Kernels and reference share the same bf16 operand quantization; remaining
    # differences are f32 accumulation-order / rare bf16 rounding-cliff effects.
    for out in (out_fast, out_tiled, out_stream):
        assert out.shape == (N_GRAPHS, NUM_CLASSES)
        assert bool(jnp.all(jnp.isfinite(out)))
        assert jnp.allclose(out, ref, atol=3e-2, rtol=3e-2), (out, ref)

    print("KERNEL_OK")
</pallas_src>

<mosaic_0001>
module attributes {stable_mosaic.version = 11 : i64} {
  func.func @_fused_small_kernel(%arg0: memref<256x256xbf16, #tpu.memory_space<vmem>>, %arg1: memref<256x128xf32, #tpu.memory_space<vmem>>, %arg2: memref<8x256xbf16, #tpu.memory_space<vmem>>, %arg3: memref<128x128xbf16, #tpu.memory_space<vmem>>, %arg4: memref<1x128xf32, #tpu.memory_space<vmem>>, %arg5: memref<128x128xbf16, #tpu.memory_space<vmem>>, %arg6: memref<1x128xf32, #tpu.memory_space<vmem>>, %arg7: memref<128x128xbf16, #tpu.memory_space<vmem>>, %arg8: memref<1x128xf32, #tpu.memory_space<vmem>>, %arg9: memref<8x128xf32, #tpu.memory_space<vmem>>) attributes {dimension_semantics = [], scalar_prefetch = 0 : i64, scratch_operands = 0 : i64, tpu.core_type = #tpu.core_type<tc>} {
    %c0 = arith.constant 0 : index
    %c0_0 = arith.constant 0 : index
    %0 = vector.load %arg1[%c0, %c0_0] : memref<256x128xf32, #tpu.memory_space<vmem>>, vector<256x128xf32>
    %cst = arith.constant 1.000000e-01 : f32
    %1 = vector.broadcast %cst : f32 to vector<256x128xf32>
    %2 = arith.mulf %1, %0 : vector<256x128xf32>
    %3 = arith.truncf %0 : vector<256x128xf32> to vector<256x128xbf16>
    %c0_1 = arith.constant 0 : index
    %c0_2 = arith.constant 0 : index
    %4 = vector.load %arg0[%c0_1, %c0_2] : memref<256x256xbf16, #tpu.memory_space<vmem>>, vector<256x256xbf16>
    %cst_3 = arith.constant dense<0.000000e+00> : vector<256x128xf32>
    %5 = tpu.matmul %4, %3, %cst_3 {dimension_numbers = #tpu.dot_dimension_numbers<[1], [0], [0], [1], [0, 0, 1, 1], [], []>} : vector<256x256xbf16>, vector<256x128xbf16>, vector<256x128xf32> -> vector<256x128xf32>
    %cst_4 = arith.constant 3.000000e-01 : f32
    %6 = vector.broadcast %cst_4 : f32 to vector<256x128xf32>
    %7 = arith.mulf %6, %5 : vector<256x128xf32>
    %8 = arith.addf %2, %7 : vector<256x128xf32>
    %9 = arith.truncf %5 : vector<256x128xf32> to vector<256x128xbf16>
    %c0_5 = arith.constant 0 : index
    %c0_6 = arith.constant 0 : index
    %10 = vector.load %arg0[%c0_5, %c0_6] : memref<256x256xbf16, #tpu.memory_space<vmem>>, vector<256x256xbf16>
    %cst_7 = arith.constant dense<0.000000e+00> : vector<256x128xf32>
    %11 = tpu.matmul %10, %9, %cst_7 {dimension_numbers = #tpu.dot_dimension_numbers<[1], [0], [0], [1], [0, 0, 1, 1], [], []>} : vector<256x256xbf16>, vector<256x128xbf16>, vector<256x128xf32> -> vector<256x128xf32>
    %cst_8 = arith.constant 3.000000e-01 : f32
    %12 = vector.broadcast %cst_8 : f32 to vector<256x128xf32>
    %13 = arith.mulf %12, %11 : vector<256x128xf32>
    %14 = arith.addf %8, %13 : vector<256x128xf32>
    %15 = arith.truncf %11 : vector<256x128xf32> to vector<256x128xbf16>
    %c0_9 = arith.constant 0 : index
    %c0_10 = arith.constant 0 : index
    %16 = vector.load %arg0[%c0_9, %c0_10] : memref<256x256xbf16, #tpu.memory_space<vmem>>, vector<256x256xbf16>
    %cst_11 = arith.constant dense<0.000000e+00> : vector<256x128xf32>
    %17 = tpu.matmul %16, %15, %cst_11 {dimension_numbers = #tpu.dot_dimension_numbers<[1], [0], [0], [1], [0, 0, 1, 1], [], []>} : vector<256x256xbf16>, vector<256x128xbf16>, vector<256x128xf32> -> vector<256x128xf32>
    %cst_12 = arith.constant 3.000000e-01 : f32
    %18 = vector.broadcast %cst_12 : f32 to vector<256x128xf32>
    %19 = arith.mulf %18, %17 : vector<256x128xf32>
    %20 = arith.addf %14, %19 : vector<256x128xf32>
    %21 = arith.truncf %20 : vector<256x128xf32> to vector<256x128xbf16>
    %c0_13 = arith.constant 0 : index
    %c0_14 = arith.constant 0 : index
    %22 = vector.load %arg3[%c0_13, %c0_14] : memref<128x128xbf16, #tpu.memory_space<vmem>>, vector<128x128xbf16>
    %cst_15 = arith.constant dense<0.000000e+00> : vector<256x128xf32>
    %23 = tpu.matmul %21, %22, %cst_15 {dimension_numbers = #tpu.dot_dimension_numbers<[1], [0], [0], [1], [0, 0, 1, 1], [], []>} : vector<256x128xbf16>, vector<128x128xbf16>, vector<256x128xf32> -> vector<256x128xf32>
    %c0_16 = arith.constant 0 : index
    %c0_17 = arith.constant 0 : index
    %24 = vector.load %arg4[%c0_16, %c0_17] : memref<1x128xf32, #tpu.memory_space<vmem>>, vector<1x128xf32>
    %25 = vector.broadcast %24 : vector<1x128xf32> to vector<256x128xf32>
    %26 = arith.addf %23, %25 : vector<256x128xf32>
    %c0_18 = arith.constant 0 : index
    %c0_19 = arith.constant 0 : index
    %27 = vector.load %arg2[%c0_18, %c0_19] : memref<8x256xbf16, #tpu.memory_space<vmem>>, vector<8x256xbf16>
    %28 = arith.truncf %26 : vector<256x128xf32> to vector<256x128xbf16>
    %cst_20 = arith.constant dense<0.000000e+00> : vector<8x128xf32>
    %29 = tpu.matmul %27, %28, %cst_20 {dimension_numbers = #tpu.dot_dimension_numbers<[1], [0], [0], [1], [0, 0, 1, 1], [], []>} : vector<8x256xbf16>, vector<256x128xbf16>, vector<8x128xf32> -> vector<8x128xf32>
    %30 = arith.truncf %29 : vector<8x128xf32> to vector<8x128xbf16>
    %c0_21 = arith.constant 0 : index
    %c0_22 = arith.constant 0 : index
    %31 = vector.load %arg5[%c0_21, %c0_22] : memref<128x128xbf16, #tpu.memory_space<vmem>>, vector<128x128xbf16>
    %cst_23 = arith.constant dense<0.000000e+00> : vector<8x128xf32>
    %32 = tpu.matmul %30, %31, %cst_23 {dimension_numbers = #tpu.dot_dimension_numbers<[1], [0], [0], [1], [0, 0, 1, 1], [], []>} : vector<8x128xbf16>, vector<128x128xbf16>, vector<8x128xf32> -> vector<8x128xf32>
    %c0_24 = arith.constant 0 : index
    %c0_25 = arith.constant 0 : index
    %33 = vector.load %arg6[%c0_24, %c0_25] : memref<1x128xf32, #tpu.memory_space<vmem>>, vector<1x128xf32>
    %34 = vector.broadcast %33 : vector<1x128xf32> to vector<8x128xf32>
    %35 = arith.addf %32, %34 : vector<8x128xf32>
    %cst_26 = arith.constant 0.000000e+00 : f32
    %36 = vector.broadcast %cst_26 : f32 to vector<8x128xf32>
    %37 = arith.maximumf %35, %36 : vector<8x128xf32>
    %38 = arith.truncf %37 : vector<8x128xf32> to vector<8x128xbf16>
    %c0_27 = arith.constant 0 : index
    %c0_28 = arith.constant 0 : index
    %39 = vector.load %arg7[%c0_27, %c0_28] : memref<128x128xbf16, #tpu.memory_space<vmem>>, vector<128x128xbf16>
    %cst_29 = arith.constant dense<0.000000e+00> : vector<8x128xf32>
    %40 = tpu.matmul %38, %39, %cst_29 {dimension_numbers = #tpu.dot_dimension_numbers<[1], [0], [0], [1], [0, 0, 1, 1], [], []>} : vector<8x128xbf16>, vector<128x128xbf16>, vector<8x128xf32> -> vector<8x128xf32>
    %c0_30 = arith.constant 0 : index
    %c0_31 = arith.constant 0 : index
    %41 = vector.load %arg8[%c0_30, %c0_31] : memref<1x128xf32, #tpu.memory_space<vmem>>, vector<1x128xf32>
    %42 = vector.broadcast %41 : vector<1x128xf32> to vector<8x128xf32>
    %43 = arith.addf %40, %42 : vector<8x128xf32>
    %44 = tpu.iota {dimensions = array<i32: 1>} : vector<8x128xi32>
    %c4_i32 = arith.constant 4 : i32
    %45 = vector.broadcast %c4_i32 : i32 to vector<8x128xi32>
    %46 = arith.cmpi slt, %44, %45 : vector<8x128xi32>
    %cst_32 = arith.constant -1.000000e+30 : f32
    %47 = vector.broadcast %cst_32 : f32 to vector<8x128xf32>
    %48 = arith.select %46, %43, %47 : vector<8x128xi1>, vector<8x128xf32>
    %cst_33 = arith.constant dense<0xFF800000> : vector<8xf32>
    %49 = vector.multi_reduction <maximumf>, %48, %cst_33 [1] : vector<8x128xf32> to vector<8xf32>
    %50 = vector.shape_cast %49 : vector<8xf32> to vector<8x1xf32>
    %51 = vector.broadcast %50 : vector<8x1xf32> to vector<8x128xf32>
    %52 = arith.subf %48, %51 : vector<8x128xf32>
    %53 = math.exp %52 : vector<8x128xf32>
    %cst_34 = arith.constant dense<0.000000e+00> : vector<8xf32>
    %54 = vector.multi_reduction <add>, %53, %cst_34 [1] : vector<8x128xf32> to vector<8xf32>
    %55 = vector.shape_cast %54 : vector<8xf32> to vector<8x1xf32>
    %56 = math.log %55 : vector<8x1xf32>
    %57 = vector.broadcast %56 : vector<8x1xf32> to vector<8x128xf32>
    %58 = arith.subf %52, %57 : vector<8x128xf32>
    %c0_35 = arith.constant 0 : index
    %c0_36 = arith.constant 0 : index
    %59 = vector.load %arg9[%c0_35, %c0_36] : memref<8x128xf32, #tpu.memory_space<vmem>>, vector<8x128xf32>
    tpu.vector_store %arg9[%c0_35, %c0_36], %58 {strides = array<i32>} : memref<8x128xf32, #tpu.memory_space<vmem>>, vector<8x128xf32>,
    return
  }
}

</mosaic_0001>

<llo_original>
// kernel: tpu_custom_call.1
$region0: #{tpu_custom_call.1}
  #allocation0 [shape = 'u32[]', space=smem, size = 0x4, offset = 0x4, fixed_abs, tag = 'smem constant byte address 0x4 - core index']
  #allocation1 [shape = 'u32[144,128]{1,0:T(1,128)}', space=vmem, size = 0x12000, scoped, tag = 'internal scratch']
  %s0 = inlined_call_operand.hbm [shape: bf16[256,256], index: 0, kind: input, shape index: {}]
  %s1 = inlined_call_operand.hbm [shape: f32[256,128], index: 1, kind: input, shape index: {}]
  %s2 = inlined_call_operand.hbm [shape: bf16[8,256], index: 2, kind: input, shape index: {}]
  %s3 = inlined_call_operand.hbm [shape: bf16[128,128], index: 3, kind: input, shape index: {}]
  %s4 = inlined_call_operand.vmem [shape: f32[1,128], index: 4, kind: input, shape index: {}]
  %s5 = inlined_call_operand.hbm [shape: bf16[128,128], index: 5, kind: input, shape index: {}]
  %s6 = inlined_call_operand.vmem [shape: f32[1,128], index: 6, kind: input, shape index: {}]
  %s7 = inlined_call_operand.hbm [shape: bf16[128,128], index: 7, kind: input, shape index: {}]
  %s8 = inlined_call_operand.vmem [shape: f32[1,128], index: 8, kind: input, shape index: {}]
  %s9 = inlined_call_operand.hbm [shape: f32[8,128], index: 9, kind: output, shape index: {}]
  %s10 = sld [smem:[#allocation0]]
  $region70: #{tpu_custom_call.1} parent=0
    _
  %s12 = ssub.s32 1, %s10
  %s13 = scalar_select 0, %s12, %s10
  $region1: #{tpu_custom_call.1} parent=0
    #allocation2 [shape = 'u8[131072]{0}', space=vmem, size = 0x20000, scoped, tag = 'input window, operand 0, single buffered']
    #allocation3 [shape = 's32[1]{0}', space=sflag, size = 0x4, scoped, tag = 'scoped memory for tpu_custom_call.1']
    #allocation4 [shape = 's32[1]{0}', space=sflag, size = 0x4, scoped, tag = 'scoped memory for tpu_custom_call.1']
    #allocation5 [shape = 'u8[131072]{0}', space=vmem, size = 0x20000, scoped, tag = 'input window, operand 1, single buffered']
    #allocation6 [shape = 's32[1]{0}', space=sflag, size = 0x4, scoped, tag = 'scoped memory for tpu_custom_call.1']
    #allocation7 [shape = 'u8[4096]{0}', space=vmem, size = 0x1000, scoped, tag = 'input window, operand 2, single buffered']
    #allocation8 [shape = 'u8[32768]{0}', space=vmem, size = 0x8000, scoped, tag = 'input window, operand 3, single buffered']
    #allocation9 [shape = 's32[1]{0}', space=sflag, size = 0x4, scoped, tag = 'scoped memory for tpu_custom_call.1']
    #allocation10 [shape = 'u8[32768]{0}', space=vmem, size = 0x8000, scoped, tag = 'input window, operand 5, single buffered']
    #allocation11 [shape = 'u8[32768]{0}', space=vmem, size = 0x8000, scoped, tag = 'input window, operand 7, single buffered']
    #allocation12 [shape = 's32[1]{0}', space=sflag, size = 0x4, scoped, tag = 'scoped memory for tpu_custom_call.1']
    #allocation13 [shape = 'u8[4096]{0}', space=vmem, size = 0x1000, scoped, tag = 'output window, operand 0, single buffered']
    %14 = vsyncpa [#allocation3], 0
    %15 = vsyncpa [#allocation6], 0
    %16 = vsyncpa [#allocation9], 0
    %17 = vsyncpa [#allocation12], 0
    %18 = vsyncpa [#allocation4], 0
    // Predicated region
    $region2: #{tpu_custom_call.1} parent=1 // pred_check
      _
    $region3: #{tpu_custom_call.1} parent=1 // pred_check_branch
      %20 = sbr.rel (0) target = $region5
    $region4: #{tpu_custom_call.1} parent=1 // pred_region
      %s22 = ssub.s32 4096, 4096
      %23 = vsyncadd [#allocation3], %s22
      %s24 = sshll.u32 [#allocation2], 4
      %s25 = int_to_ptr.vmem [resolvable:$true] %s24
      %30 = dma.hbm_to_vmem [thread:$0]  %s0, 4096, %s25, [#allocation3], 128, 128, 8
    $region5: #{tpu_custom_call.1} parent=1 // pred_fallthru
      _
    // Predicated region
    $region6: #{tpu_custom_call.1} parent=1 // pred_check
      _
    $region7: #{tpu_custom_call.1} parent=1 // pred_check_branch
      %32 = sbr.rel (0) target = $region9
    $region8: #{tpu_custom_call.1} parent=1 // pred_region
      %s34 = ssub.s32 4096, 4096
      %35 = vsyncadd [#allocation6], %s34
      %s36 = sshll.u32 [#allocation5], 4
      %s37 = int_to_ptr.vmem [resolvable:$true] %s36
      %42 = dma.hbm_to_vmem [thread:$0]  %s1, 4096, %s37, [#allocation6], 128, 128, 8
    $region9: #{tpu_custom_call.1} parent=1 // pred_fallthru
      _
    // Predicated region
    $region10: #{tpu_custom_call.1} parent=1 // pred_check
      _
    $region11: #{tpu_custom_call.1} parent=1 // pred_check_branch
      %44 = sbr.rel (0) target = $region13
    $region12: #{tpu_custom_call.1} parent=1 // pred_region
      %s46 = ssub.s32 128, 128
      %47 = vsyncadd [#allocation6], %s46
      %s49 = sshll.u32 [#allocation7], 4
      %s50 = int_to_ptr.vmem [resolvable:$true] %s49
      %52 = dma.hbm_to_vmem [thread:$0]  %s2, 128, %s50, [#allocation6]
    $region13: #{tpu_custom_call.1} parent=1 // pred_fallthru
      _
    // Predicated region
    $region14: #{tpu_custom_call.1} parent=1 // pred_check
      _
    $region15: #{tpu_custom_call.1} parent=1 // pred_check_branch
      %54 = sbr.rel (0) target = $region17
    $region16: #{tpu_custom_call.1} parent=1 // pred_region
      %s56 = ssub.s32 1024, 1024
      %57 = vsyncadd [#allocation9], %s56
      %s58 = sshll.u32 [#allocation8], 4
      %s59 = int_to_ptr.vmem [resolvable:$true] %s58
      %64 = dma.hbm_to_vmem [thread:$0]  %s3, 1024, %s59, [#allocation9], 64, 64, 4
    $region17: #{tpu_custom_call.1} parent=1 // pred_fallthru
      _
    // Predicated region
    $region18: #{tpu_custom_call.1} parent=1 // pred_check
      _
    $region19: #{tpu_custom_call.1} parent=1 // pred_check_branch
      %66 = sbr.rel (0) target = $region21
    $region20: #{tpu_custom_call.1} parent=1 // pred_region
      _
    $region21: #{tpu_custom_call.1} parent=1 // pred_fallthru
      _
    // Predicated region
    $region22: #{tpu_custom_call.1} parent=1 // pred_check
      _
    $region23: #{tpu_custom_call.1} parent=1 // pred_check_branch
      %68 = sbr.rel (0) target = $region25
    $region24: #{tpu_custom_call.1} parent=1 // pred_region
      %s70 = ssub.s32 1024, 1024
      %71 = vsyncadd [#allocation9], %s70
      %s72 = sshll.u32 [#allocation10], 4
      %s73 = int_to_ptr.vmem [resolvable:$true] %s72
      %78 = dma.hbm_to_vmem [thread:$0]  %s5, 1024, %s73, [#allocation9], 64, 64, 4
    $region25: #{tpu_custom_call.1} parent=1 // pred_fallthru
      _
    // Predicated region
    $region26: #{tpu_custom_call.1} parent=1 // pred_check
      _
    $region27: #{tpu_custom_call.1} parent=1 // pred_check_branch
      %80 = sbr.rel (0) target = $region29
    $region28: #{tpu_custom_call.1} parent=1 // pred_region
      _
    $region29: #{tpu_custom_call.1} parent=1 // pred_fallthru
      _
    // Predicated region
    $region30: #{tpu_custom_call.1} parent=1 // pred_check
      _
    $region31: #{tpu_custom_call.1} parent=1 // pred_check_branch
      %82 = sbr.rel (0) target = $region33
    $region32: #{tpu_custom_call.1} parent=1 // pred_region
      %s84 = ssub.s32 1024, 1024
      %85 = vsyncadd [#allocation12], %s84
      %s86 = sshll.u32 [#allocation11], 4
      %s87 = int_to_ptr.vmem [resolvable:$true] %s86
      %92 = dma.hbm_to_vmem [thread:$0]  %s7, 1024, %s87, [#allocation12], 64, 64, 4
    $region33: #{tpu_custom_call.1} parent=1 // pred_fallthru
      _
    // Predicated region
    $region34: #{tpu_custom_call.1} parent=1 // pred_check
      _
    $region35: #{tpu_custom_call.1} parent=1 // pred_check_branch
      %94 = sbr.rel (0) target = $region37
    $region36: #{tpu_custom_call.1} parent=1 // pred_region
      _
    $region37: #{tpu_custom_call.1} parent=1 // pred_fallthru
      _
    // Predicated region
    $region38: #{tpu_custom_call.1} parent=1 // pred_check
      _
    $region39: #{tpu_custom_call.1} parent=1 // pred_check_branch
      %96 = sbr.rel (0) target = $region41
    $region40: #{tpu_custom_call.1} parent=1 // pred_region
      %97 = dma.done [#allocation3], 4096
    $region41: #{tpu_custom_call.1} parent=1 // pred_fallthru
      _
    // Predicated region
    $region42: #{tpu_custom_call.1} parent=1 // pred_check
      _
    $region43: #{tpu_custom_call.1} parent=1 // pred_check_branch
      %99 = sbr.rel (0) target = $region45
    $region44: #{tpu_custom_call.1} parent=1 // pred_region
      %100 = dma.done [#allocation6], 4096
    $region45: #{tpu_custom_call.1} parent=1 // pred_fallthru
      _
    // Predicated region
    $region46: #{tpu_custom_call.1} parent=1 // pred_check
      _
    $region47: #{tpu_custom_call.1} parent=1 // pred_check_branch
      %102 = sbr.rel (0) target = $region49
    $region48: #{tpu_custom_call.1} parent=1 // pred_region
      %103 = dma.done [#allocation6], 128
    $region49: #{tpu_custom_call.1} parent=1 // pred_fallthru
      _
    // Predicated region
    $region50: #{tpu_custom_call.1} parent=1 // pred_check
      _
    $region51: #{tpu_custom_call.1} parent=1 // pred_check_branch
      %105 = sbr.rel (0) target = $region53
    $region52: #{tpu_custom_call.1} parent=1 // pred_region
      %106 = dma.done [#allocation9], 1024
    $region53: #{tpu_custom_call.1} parent=1 // pred_fallthru
      _
    // Predicated region
    $region54: #{tpu_custom_call.1} parent=1 // pred_check
      _
    $region55: #{tpu_custom_call.1} parent=1 // pred_check_branch
      %108 = sbr.rel (0) target = $region57
    $region56: #{tpu_custom_call.1} parent=1 // pred_region
      %109 = dma.done [#allocation9], 1024
    $region57: #{tpu_custom_call.1} parent=1 // pred_fallthru
      _
    // Predicated region
    $region58: #{tpu_custom_call.1} parent=1 // pred_check
      _
    $region59: #{tpu_custom_call.1} parent=1 // pred_check_branch
      %111 = sbr.rel (0) target = $region61
    $region60: #{tpu_custom_call.1} parent=1 // pred_region
      %112 = dma.done [#allocation12], 1024
    $region61: #{tpu_custom_call.1} parent=1 // pred_fallthru
      _
    %v114 = vld [vmem:[#allocation5] sm:$0xff]
    %v115 = vld [vmem:[#allocation5 + $0x8] sm:$0xff]
    %v116 = vld [vmem:[#allocation5 + $0x10] sm:$0xff]
    %v117 = vld [vmem:[#allocation5 + $0x18] sm:$0xff]
    %v118 = vld [vmem:[#allocation5 + $0x20] sm:$0xff]
    %v119 = vld [vmem:[#allocation5 + $0x28] sm:$0xff]
    %v120 = vld [vmem:[#allocation5 + $0x30] sm:$0xff]
    %v121 = vld [vmem:[#allocation5 + $0x38] sm:$0xff]
    %v122 = vld [vmem:[#allocation5 + $0x40] sm:$0xff]
    %v123 = vld [vmem:[#allocation5 + $0x48] sm:$0xff]
    %v124 = vld [vmem:[#allocation5 + $0x50] sm:$0xff]
    %v125 = vld [vmem:[#allocation5 + $0x58] sm:$0xff]
    %v126 = vld [vmem:[#allocation5 + $0x60] sm:$0xff]
    %v127 = vld [vmem:[#allocation5 + $0x68] sm:$0xff]
    %v128 = vld [vmem:[#allocation5 + $0x70] sm:$0xff]
    %v129 = vld [vmem:[#allocation5 + $0x78] sm:$0xff]
    %v130 = vld [vmem:[#allocation5 + $0x80] sm:$0xff]
    %v131 = vld [vmem:[#allocation5 + $0x88] sm:$0xff]
    %v132 = vld [vmem:[#allocation5 + $0x90] sm:$0xff]
    %v133 = vld [vmem:[#allocation5 + $0x98] sm:$0xff]
    %v134 = vld [vmem:[#allocation5 + $0xa0] sm:$0xff]
    %v135 = vld [vmem:[#allocation5 + $0xa8] sm:$0xff]
    %v136 = vld [vmem:[#allocation5 + $0xb0] sm:$0xff]
    %v137 = vld [vmem:[#allocation5 + $0xb8] sm:$0xff]
    %v138 = vld [vmem:[#allocation5 + $0xc0] sm:$0xff]
    %v139 = vld [vmem:[#allocation5 + $0xc8] sm:$0xff]
    %v140 = vld [vmem:[#allocation5 + $0xd0] sm:$0xff]
    %v141 = vld [vmem:[#allocation5 + $0xd8] sm:$0xff]
    %v142 = vld [vmem:[#allocation5 + $0xe0] sm:$0xff]
    %v143 = vld [vmem:[#allocation5 + $0xe8] sm:$0xff]
    %v144 = vld [vmem:[#allocation5 + $0xf0] sm:$0xff]
    %v145 = vld [vmem:[#allocation5 + $0xf8] sm:$0xff]
    %v146 = vmul.f32 %v114, 0.1
    %v147 = vmul.f32 %v115, 0.1
    %v148 = vmul.f32 %v116, 0.1
    %v149 = vmul.f32 %v117, 0.1
    %v150 = vmul.f32 %v118, 0.1
    %v151 = vmul.f32 %v119, 0.1
    %v152 = vmul.f32 %v120, 0.1
    %v153 = vmul.f32 %v121, 0.1
    %v154 = vmul.f32 %v122, 0.1
    %v155 = vmul.f32 %v123, 0.1
    %v156 = vmul.f32 %v124, 0.1
    %v157 = vmul.f32 %v125, 0.1
    %v158 = vmul.f32 %v126, 0.1
    %v159 = vmul.f32 %v127, 0.1
    %v160 = vmul.f32 %v128, 0.1
    %v161 = vmul.f32 %v129, 0.1
    %v162 = vmul.f32 %v130, 0.1
    %v163 = vmul.f32 %v131, 0.1
    %v164 = vmul.f32 %v132, 0.1
    %v165 = vmul.f32 %v133, 0.1
    %v166 = vmul.f32 %v134, 0.1
    %v167 = vmul.f32 %v135, 0.1
    %v168 = vmul.f32 %v136, 0.1
    %v169 = vmul.f32 %v137, 0.1
    %v170 = vmul.f32 %v138, 0.1
    %v171 = vmul.f32 %v139, 0.1
    %v172 = vmul.f32 %v140, 0.1
    %v173 = vmul.f32 %v141, 0.1
    %v174 = vmul.f32 %v142, 0.1
    %v175 = vmul.f32 %v143, 0.1
    %v176 = vmul.f32 %v144, 0.1
    %v177 = vmul.f32 %v145, 0.1
    %v178 = vpack.c.bf16 %v115, %v114
    %v179 = vpack.c.bf16 %v117, %v116
    %v180 = vpack.c.bf16 %v119, %v118
    %v181 = vpack.c.bf16 %v121, %v120
    %v182 = vpack.c.bf16 %v123, %v122
    %v183 = vpack.c.bf16 %v125, %v124
    %v184 = vpack.c.bf16 %v127, %v126
    %v185 = vpack.c.bf16 %v129, %v128
    %v186 = vpack.c.bf16 %v131, %v130
    %v187 = vpack.c.bf16 %v133, %v132
    %v188 = vpack.c.bf16 %v135, %v134
    %v189 = vpack.c.bf16 %v137, %v136
    %v190 = vpack.c.bf16 %v139, %v138
    %v191 = vpack.c.bf16 %v141, %v140
    %v192 = vpack.c.bf16 %v143, %v142
    %v193 = vpack.c.bf16 %v145, %v144
    %v194 = vld [vmem:[#allocation2] sm:$0xff]
    %v195 = vld [vmem:[#allocation2 + $0x8] sm:$0xff]
    %v196 = vld [vmem:[#allocation2 + $0x10] sm:$0xff]
    %v197 = vld [vmem:[#allocation2 + $0x18] sm:$0xff]
    %v198 = vld [vmem:[#allocation2 + $0x20] sm:$0xff]
    %v199 = vld [vmem:[#allocation2 + $0x28] sm:$0xff]
    %v200 = vld [vmem:[#allocation2 + $0x30] sm:$0xff]
    %v201 = vld [vmem:[#allocation2 + $0x38] sm:$0xff]
    %v202 = vld [vmem:[#allocation2 + $0x40] sm:$0xff]
    %v203 = vld [vmem:[#allocation2 + $0x48] sm:$0xff]
    %v204 = vld [vmem:[#allocation2 + $0x50] sm:$0xff]
    %v205 = vld [vmem:[#allocation2 + $0x58] sm:$0xff]
    %v206 = vld [vmem:[#allocation2 + $0x60] sm:$0xff]
    %v207 = vld [vmem:[#allocation2 + $0x68] sm:$0xff]
    %v208 = vld [vmem:[#allocation2 + $0x70] sm:$0xff]
    %v209 = vld [vmem:[#allocation2 + $0x78] sm:$0xff]
    %v210 = vld [vmem:[#allocation2 + $0x80] sm:$0xff]
    %v211 = vld [vmem:[#allocation2 + $0x88] sm:$0xff]
    %v212 = vld [vmem:[#allocation2 + $0x90] sm:$0xff]
    %v213 = vld [vmem:[#allocation2 + $0x98] sm:$0xff]
    %v214 = vld [vmem:[#allocation2 + $0xa0] sm:$0xff]
    %v215 = vld [vmem:[#allocation2 + $0xa8] sm:$0xff]
    %v216 = vld [vmem:[#allocation2 + $0xb0] sm:$0xff]
    %v217 = vld [vmem:[#allocation2 + $0xb8] sm:$0xff]
    %v218 = vld [vmem:[#allocation2 + $0xc0] sm:$0xff]
    %v219 = vld [vmem:[#allocation2 + $0xc8] sm:$0xff]
    %v220 = vld [vmem:[#allocation2 + $0xd0] sm:$0xff]
    %v221 = vld [vmem:[#allocation2 + $0xd8] sm:$0xff]
    %v222 = vld [vmem:[#allocation2 + $0xe0] sm:$0xff]
    %v223 = vld [vmem:[#allocation2 + $0xe8] sm:$0xff]
    %v224 = vld [vmem:[#allocation2 + $0xf0] sm:$0xff]
    %v225 = vld [vmem:[#allocation2 + $0xf8] sm:$0xff]
    %v258 = vunpack.c.l.b16 %v194
    %v259 = vunpack.c.h.b16 %v194
    %v260 = vunpack.c.l.b16 %v195
    %v261 = vunpack.c.h.b16 %v195
    %v262 = vunpack.c.l.b16 %v196
    %v263 = vunpack.c.h.b16 %v196
    %v264 = vunpack.c.l.b16 %v197
    %v265 = vunpack.c.h.b16 %v197
    %v266 = vunpack.c.l.b16 %v198
    %v267 = vunpack.c.h.b16 %v198
    %v268 = vunpack.c.l.b16 %v199
    %v269 = vunpack.c.h.b16 %v199
    %v270 = vunpack.c.l.b16 %v200
    %v271 = vunpack.c.h.b16 %v200
    %v272 = vunpack.c.l.b16 %v201
    %v273 = vunpack.c.h.b16 %v201
    %v274 = vunpack.c.l.b16 %v202
    %v275 = vunpack.c.h.b16 %v202
    %v276 = vunpack.c.l.b16 %v203
    %v277 = vunpack.c.h.b16 %v203
    %v278 = vunpack.c.l.b16 %v204
    %v279 = vunpack.c.h.b16 %v204
    %v280 = vunpack.c.l.b16 %v205
    %v281 = vunpack.c.h.b16 %v205
    %v282 = vunpack.c.l.b16 %v206
    %v283 = vunpack.c.h.b16 %v206
    %v284 = vunpack.c.l.b16 %v207
    %v285 = vunpack.c.h.b16 %v207
    %v286 = vunpack.c.l.b16 %v208
    %v287 = vunpack.c.h.b16 %v208
    %v288 = vunpack.c.l.b16 %v209
    %v289 = vunpack.c.h.b16 %v209
    %v290 = vunpack.c.l.b16 %v210
    %v291 = vunpack.c.h.b16 %v210
    %v292 = vunpack.c.l.b16 %v211
    %v293 = vunpack.c.h.b16 %v211
    %v294 = vunpack.c.l.b16 %v212
    %v295 = vunpack.c.h.b16 %v212
    %v296 = vunpack.c.l.b16 %v213
    %v297 = vunpack.c.h.b16 %v213
    %v298 = vunpack.c.l.b16 %v214
    %v299 = vunpack.c.h.b16 %v214
    %v300 = vunpack.c.l.b16 %v215
    %v301 = vunpack.c.h.b16 %v215
    %v302 = vunpack.c.l.b16 %v216
    %v303 = vunpack.c.h.b16 %v216
    %v304 = vunpack.c.l.b16 %v217
    %v305 = vunpack.c.h.b16 %v217
    %v306 = vunpack.c.l.b16 %v218
    %v307 = vunpack.c.h.b16 %v218
    %v308 = vunpack.c.l.b16 %v219
    %v309 = vunpack.c.h.b16 %v219
    %v310 = vunpack.c.l.b16 %v220
    %v311 = vunpack.c.h.b16 %v220
    %v312 = vunpack.c.l.b16 %v221
    %v313 = vunpack.c.h.b16 %v221
    %v314 = vunpack.c.l.b16 %v222
    %v315 = vunpack.c.h.b16 %v222
    %v316 = vunpack.c.l.b16 %v223
    %v317 = vunpack.c.h.b16 %v223
    %v318 = vunpack.c.l.b16 %v224
    %v319 = vunpack.c.h.b16 %v224
    %v320 = vunpack.c.l.b16 %v225
    %v321 = vunpack.c.h.b16 %v225
    %v322 = vpack.c.b16 %v260, %v258
    %v323 = vpack.c.b16 %v261, %v259
    %v324 = vpack.c.b16 %v264, %v262
    %v325 = vpack.c.b16 %v265, %v263
    %v326 = vpack.c.b16 %v268, %v266
    %v327 = vpack.c.b16 %v269, %v267
    %v328 = vpack.c.b16 %v272, %v270
    %v329 = vpack.c.b16 %v273, %v271
    %v330 = vpack.c.b16 %v276, %v274
    %v331 = vpack.c.b16 %v277, %v275
    %v332 = vpack.c.b16 %v280, %v278
    %v333 = vpack.c.b16 %v281, %v279
    %v334 = vpack.c.b16 %v284, %v282
    %v335 = vpack.c.b16 %v285, %v283
    %v336 = vpack.c.b16 %v288, %v286
    %v337 = vpack.c.b16 %v289, %v287
    %v338 = vpack.c.b16 %v292, %v290
    %v339 = vpack.c.b16 %v293, %v291
    %v340 = vpack.c.b16 %v296, %v294
    %v341 = vpack.c.b16 %v297, %v295
    %v342 = vpack.c.b16 %v300, %v298
    %v343 = vpack.c.b16 %v301, %v299
    %v344 = vpack.c.b16 %v304, %v302
    %v345 = vpack.c.b16 %v305, %v303
    %v346 = vpack.c.b16 %v308, %v306
    %v347 = vpack.c.b16 %v309, %v307
    %v348 = vpack.c.b16 %v312, %v310
    %v349 = vpack.c.b16 %v313, %v311
    %v350 = vpack.c.b16 %v316, %v314
    %v351 = vpack.c.b16 %v317, %v315
    %v352 = vpack.c.b16 %v320, %v318
    %v353 = vpack.c.b16 %v321, %v319
    %386 = vmatprep.subr.bf16.mxu0 0
    %387 = vmatpush1.bf16.msra.mxu0 %v185
    %388 = vmatprep.subr.bf16.mxu0 0
    %389 = vmatpush1.bf16.msra.mxu0 %v184
    %390 = vmatprep.subr.bf16.mxu0 0
    %391 = vmatpush1.bf16.msra.mxu0 %v183
    %392 = vmatprep.subr.bf16.mxu0 0
    %393 = vmatpush1.bf16.msra.mxu0 %v182
    %394 = vmatprep.subr.bf16.mxu0 0
    %395 = vmatpush1.bf16.msra.mxu0 %v181
    %396 = vmatprep.subr.bf16.mxu0 0
    %397 = vmatpush1.bf16.msra.mxu0 %v180
    %398 = vmatprep.subr.bf16.mxu0 0
    %399 = vmatpush1.bf16.msra.mxu0 %v179
    %400 = vmatprep.subr.bf16.mxu0 0
    %401 = vmatpush1.bf16.msra.mxu0 %v178
    %402 = vmatprep.subr.bf16.mxu0 0
    %403 = vmatpush2.bf16.msra.mxu0 %v193
    %404 = vmatprep.subr.bf16.mxu0 0
    %405 = vmatpush2.bf16.msra.mxu0 %v192
    %406 = vmatprep.subr.bf16.mxu0 0
    %407 = vmatpush2.bf16.msra.mxu0 %v191
    %408 = vmatprep.subr.bf16.mxu0 0
    %409 = vmatpush2.bf16.msra.mxu0 %v190
    %410 = vmatprep.subr.bf16.mxu0 0
    %411 = vmatpush2.bf16.msra.mxu0 %v189
    %412 = vmatprep.subr.bf16.mxu0 0
    %413 = vmatpush2.bf16.msra.mxu0 %v188
    %414 = vmatprep.subr.bf16.mxu0 0
    %415 = vmatpush2.bf16.msra.mxu0 %v187
    %416 = vmatprep.subr.bf16.mxu0 0
    %417 = vmatpush2.bf16.msra.mxu0 %v186
    %418 = vmatprep.mubr.bf16.mxu0 %v323
    %419 = vmatmul.mubr.bf16.gmra.mxu0 %v322
    %v420 = vpop.f32.mrf.mxu0
    %v421 = vadd.f32 0.0, %v420
    %v422 = vpop.f32.mrf.mxu0
    %v423 = vpop.f32.mrf.mxu0
    %v424 = vadd.f32 0.0, %v423
    %v425 = vpop.f32.mrf.mxu0
    %426 = vmatprep.mubr.bf16.mxu0 %v325
    %427 = vmatmul.mubr.bf16.gmra.mxu0 %v324
    %v428 = vpop.f32.mrf.mxu0
    %v429 = vadd.f32 0.0, %v428
    %v430 = vpop.f32.mrf.mxu0
    %v431 = vpop.f32.mrf.mxu0
    %v432 = vadd.f32 0.0, %v431
    %v433 = vpop.f32.mrf.mxu0
    %434 = vmatprep.mubr.bf16.mxu0 %v327
    %435 = vmatmul.mubr.bf16.gmra.mxu0 %v326
    %v436 = vpop.f32.mrf.mxu0
    %v437 = vadd.f32 0.0, %v436
    %v438 = vpop.f32.mrf.mxu0
    %v439 = vpop.f32.mrf.mxu0
    %v440 = vadd.f32 0.0, %v439
    %v441 = vpop.f32.mrf.mxu0
    %442 = vmatprep.mubr.bf16.mxu0 %v329
    %443 = vmatmul.mubr.bf16.gmra.mxu0 %v328
    %v444 = vpop.f32.mrf.mxu0
    %v445 = vadd.f32 0.0, %v444
    %v446 = vpop.f32.mrf.mxu0
    %v447 = vpop.f32.mrf.mxu0
    %v448 = vadd.f32 0.0, %v447
    %v449 = vpop.f32.mrf.mxu0
    %450 = vmatprep.mubr.bf16.mxu0 %v331
    %451 = vmatmul.mubr.bf16.gmra.mxu0 %v330
    %v452 = vpop.f32.mrf.mxu0
    %v453 = vadd.f32 0.0, %v452
    %v454 = vpop.f32.mrf.mxu0
    %v455 = vpop.f32.mrf.mxu0
    %v456 = vadd.f32 0.0, %v455
    %v457 = vpop.f32.mrf.mxu0
    %458 = vmatprep.mubr.bf16.mxu0 %v333
    %459 = vmatmul.mubr.bf16.gmra.mxu0 %v332
    %v460 = vpop.f32.mrf.mxu0
    %v461 = vadd.f32 0.0, %v460
    %v462 = vpop.f32.mrf.mxu0
    %v463 = vpop.f32.mrf.mxu0
    %v464 = vadd.f32 0.0, %v463
    %v465 = vpop.f32.mrf.mxu0
    %466 = vmatprep.mubr.bf16.mxu0 %v335
    %467 = vmatmul.mubr.bf16.gmra.mxu0 %v334
    %v468 = vpop.f32.mrf.mxu0
    %v469 = vadd.f32 0.0, %v468
    %v470 = vpop.f32.mrf.mxu0
    %v471 = vpop.f32.mrf.mxu0
    %v472 = vadd.f32 0.0, %v471
    %v473 = vpop.f32.mrf.mxu0
    %474 = vmatprep.mubr.bf16.mxu0 %v337
    %475 = vmatmul.mubr.bf16.gmra.mxu0 %v336
    %v476 = vpop.f32.mrf.mxu0
    %v477 = vadd.f32 0.0, %v476
    %v478 = vpop.f32.mrf.mxu0
    %v479 = vpop.f32.mrf.mxu0
    %v480 = vadd.f32 0.0, %v479
    %v481 = vpop.f32.mrf.mxu0
    %482 = vmatprep.mubr.bf16.mxu0 %v339
    %483 = vmatmul.mubr.bf16.gmra.mxu0 %v338
    %v484 = vpop.f32.mrf.mxu0
    %v485 = vadd.f32 0.0, %v484
    %v486 = vpop.f32.mrf.mxu0
    %v487 = vpop.f32.mrf.mxu0
    %v488 = vadd.f32 0.0, %v487
    %v489 = vpop.f32.mrf.mxu0
    %490 = vmatprep.mubr.bf16.mxu0 %v341
    %491 = vmatmul.mubr.bf16.gmra.mxu0 %v340
    %v492 = vpop.f32.mrf.mxu0
    %v493 = vadd.f32 0.0, %v492
    %v494 = vpop.f32.mrf.mxu0
    %v495 = vpop.f32.mrf.mxu0
    %v496 = vadd.f32 0.0, %v495
    %v497 = vpop.f32.mrf.mxu0
    %498 = vmatprep.mubr.bf16.mxu0 %v343
    %499 = vmatmul.mubr.bf16.gmra.mxu0 %v342
    %v500 = vpop.f32.mrf.mxu0
    %v501 = vadd.f32 0.0, %v500
    %v502 = vpop.f32.mrf.mxu0
    %v503 = vpop.f32.mrf.mxu0
    %v504 = vadd.f32 0.0, %v503
    %v505 = vpop.f32.mrf.mxu0
    %506 = vmatprep.mubr.bf16.mxu0 %v345
    %507 = vmatmul.mubr.bf16.gmra.mxu0 %v344
    %v508 = vpop.f32.mrf.mxu0
    %v509 = vadd.f32 0.0, %v508
    %v510 = vpop.f32.mrf.mxu0
    %v511 = vpop.f32.mrf.mxu0
    %v512 = vadd.f32 0.0, %v511
    %v513 = vpop.f32.mrf.mxu0
    %514 = vmatprep.mubr.bf16.mxu0 %v347
    %515 = vmatmul.mubr.bf16.gmra.mxu0 %v346
    %v516 = vpop.f32.mrf.mxu0
    %v517 = vadd.f32 0.0, %v516
    %v518 = vpop.f32.mrf.mxu0
    %v519 = vpop.f32.mrf.mxu0
    %v520 = vadd.f32 0.0, %v519
    %v521 = vpop.f32.mrf.mxu0
    %522 = vmatprep.mubr.bf16.mxu0 %v349
    %523 = vmatmul.mubr.bf16.gmra.mxu0 %v348
    %v524 = vpop.f32.mrf.mxu0
    %v525 = vadd.f32 0.0, %v524
    %v526 = vpop.f32.mrf.mxu0
    %v527 = vpop.f32.mrf.mxu0
    %v528 = vadd.f32 0.0, %v527
    %v529 = vpop.f32.mrf.mxu0
    %530 = vmatprep.mubr.bf16.mxu0 %v351
    %531 = vmatmul.mubr.bf16.gmra.mxu0 %v350
    %v532 = vpop.f32.mrf.mxu0
    %v533 = vadd.f32 0.0, %v532
    %v534 = vpop.f32.mrf.mxu0
    %v535 = vpop.f32.mrf.mxu0
    %v536 = vadd.f32 0.0, %v535
    %v537 = vpop.f32.mrf.mxu0
    %538 = vmatprep.mubr.bf16.mxu0 %v353
    %539 = vmatmul.mubr.bf16.gmra.mxu0 %v352
    %v540 = vpop.f32.mrf.mxu0
    %v541 = vadd.f32 0.0, %v540
    %v542 = vpop.f32.mrf.mxu0
    %v543 = vpop.f32.mrf.mxu0
    %v544 = vadd.f32 0.0, %v543
    %v545 = vpop.f32.mrf.mxu0
    %546 = vdwg.mxu0
    %v547 = vmul.f32 %v421, 0.3
    %v548 = vmul.f32 %v424, 0.3
    %v549 = vmul.f32 %v429, 0.3
    %v550 = vmul.f32 %v432, 0.3
    %v551 = vmul.f32 %v437, 0.3
    %v552 = vmul.f32 %v440, 0.3
    %v553 = vmul.f32 %v445, 0.3
    %v554 = vmul.f32 %v448, 0.3
    %v555 = vmul.f32 %v453, 0.3
    %v556 = vmul.f32 %v456, 0.3
    %v557 = vmul.f32 %v461, 0.3
    %v558 = vmul.f32 %v464, 0.3
    %v559 = vmul.f32 %v469, 0.3
    %v560 = vmul.f32 %v472, 0.3
    %v561 = vmul.f32 %v477, 0.3
    %v562 = vmul.f32 %v480, 0.3
    %v563 = vmul.f32 %v485, 0.3
    %v564 = vmul.f32 %v488, 0.3
    %v565 = vmul.f32 %v493, 0.3
    %v566 = vmul.f32 %v496, 0.3
    %v567 = vmul.f32 %v501, 0.3
    %v568 = vmul.f32 %v504, 0.3
    %v569 = vmul.f32 %v509, 0.3
    %v570 = vmul.f32 %v512, 0.3
    %v571 = vmul.f32 %v517, 0.3
    %v572 = vmul.f32 %v520, 0.3
    %v573 = vmul.f32 %v525, 0.3
    %v574 = vmul.f32 %v528, 0.3
    %v575 = vmul.f32 %v533, 0.3
    %v576 = vmul.f32 %v536, 0.3
    %v577 = vmul.f32 %v541, 0.3
    %v578 = vmul.f32 %v544, 0.3
    %v579 = vadd.f32 %v146, %v547
    %v580 = vadd.f32 %v147, %v548
    %v581 = vadd.f32 %v148, %v549
    %v582 = vadd.f32 %v149, %v550
    %v583 = vadd.f32 %v150, %v551
    %v584 = vadd.f32 %v151, %v552
    %v585 = vadd.f32 %v152, %v553
    %v586 = vadd.f32 %v153, %v554
    %v587 = vadd.f32 %v154, %v555
    %v588 = vadd.f32 %v155, %v556
    %v589 = vadd.f32 %v156, %v557
    %v590 = vadd.f32 %v157, %v558
    %v591 = vadd.f32 %v158, %v559
    %v592 = vadd.f32 %v159, %v560
    %v593 = vadd.f32 %v160, %v561
    %v594 = vadd.f32 %v161, %v562
    %v595 = vadd.f32 %v162, %v563
    %v596 = vadd.f32 %v163, %v564
    %v597 = vadd.f32 %v164, %v565
    %v598 = vadd.f32 %v165, %v566
    %v599 = vadd.f32 %v166, %v567
    %v600 = vadd.f32 %v167, %v568
    %v601 = vadd.f32 %v168, %v569
    %v602 = vadd.f32 %v169, %v570
    %v603 = vadd.f32 %v170, %v571
    %v604 = vadd.f32 %v171, %v572
    %v605 = vadd.f32 %v172, %v573
    %v606 = vadd.f32 %v173, %v574
    %v607 = vadd.f32 %v174, %v575
    %v608 = vadd.f32 %v175, %v576
    %v609 = vadd.f32 %v176, %v577
    %v610 = vadd.f32 %v177, %v578
    %v611 = vpack.c.bf16 %v424, %v421
    %v612 = vpack.c.bf16 %v432, %v429
    %v613 = vpack.c.bf16 %v440, %v437
    %v614 = vpack.c.bf16 %v448, %v445
    %v615 = vpack.c.bf16 %v456, %v453
    %v616 = vpack.c.bf16 %v464, %v461
    %v617 = vpack.c.bf16 %v472, %v469
    %v618 = vpack.c.bf16 %v480, %v477
    %v619 = vpack.c.bf16 %v488, %v485
    %v620 = vpack.c.bf16 %v496, %v493
    %v621 = vpack.c.bf16 %v504, %v501
    %v622 = vpack.c.bf16 %v512, %v509
    %v623 = vpack.c.bf16 %v520, %v517
    %v624 = vpack.c.bf16 %v528, %v525
    %v625 = vpack.c.bf16 %v536, %v533
    %v626 = vpack.c.bf16 %v544, %v541
    %627 = vmatprep.subr.bf16.mxu0 0
    %628 = vmatpush1.bf16.msra.mxu0 %v618
    %629 = vmatprep.subr.bf16.mxu0 0
    %630 = vmatpush1.bf16.msra.mxu0 %v617
    %631 = vmatprep.subr.bf16.mxu0 0
    %632 = vmatpush1.bf16.msra.mxu0 %v616
    %633 = vmatprep.subr.bf16.mxu0 0
    %634 = vmatpush1.bf16.msra.mxu0 %v615
    %635 = vmatprep.subr.bf16.mxu0 0
    %636 = vmatpush1.bf16.msra.mxu0 %v614
    %637 = vmatprep.subr.bf16.mxu0 0
    %638 = vmatpush1.bf16.msra.mxu0 %v613
    %639 = vmatprep.subr.bf16.mxu0 0
    %640 = vmatpush1.bf16.msra.mxu0 %v612
    %641 = vmatprep.subr.bf16.mxu0 0
    %642 = vmatpush1.bf16.msra.mxu0 %v611
    %643 = vmatprep.subr.bf16.mxu0 0
    %644 = vmatpush2.bf16.msra.mxu0 %v626
    %645 = vmatprep.subr.bf16.mxu0 0
    %646 = vmatpush2.bf16.msra.mxu0 %v625
    %647 = vmatprep.subr.bf16.mxu0 0
    %648 = vmatpush2.bf16.msra.mxu0 %v624
    %649 = vmatprep.subr.bf16.mxu0 0
    %650 = vmatpush2.bf16.msra.mxu0 %v623
    %651 = vmatprep.subr.bf16.mxu0 0
    %652 = vmatpush2.bf16.msra.mxu0 %v622
    %653 = vmatprep.subr.bf16.mxu0 0
    %654 = vmatpush2.bf16.msra.mxu0 %v621
    %655 = vmatprep.subr.bf16.mxu0 0
    %656 = vmatpush2.bf16.msra.mxu0 %v620
    %657 = vmatprep.subr.bf16.mxu0 0
    %658 = vmatpush2.bf16.msra.mxu0 %v619
    %659 = vmatprep.mubr.bf16.mxu0 %v323
    %660 = vmatmul.mubr.bf16.gmra.mxu0 %v322
    %v661 = vpop.f32.mrf.mxu0
    %v662 = vadd.f32 0.0, %v661
    %v663 = vpop.f32.mrf.mxu0
    %v664 = vpop.f32.mrf.mxu0
    %v665 = vadd.f32 0.0, %v664
    %v666 = vpop.f32.mrf.mxu0
    %667 = vmatprep.mubr.bf16.mxu0 %v325
    %668 = vmatmul.mubr.bf16.gmra.mxu0 %v324
    %v669 = vpop.f32.mrf.mxu0
    %v670 = vadd.f32 0.0, %v669
    %v671 = vpop.f32.mrf.mxu0
    %v672 = vpop.f32.mrf.mxu0
    %v673 = vadd.f32 0.0, %v672
    %v674 = vpop.f32.mrf.mxu0
    %675 = vmatprep.mubr.bf16.mxu0 %v327
    %676 = vmatmul.mubr.bf16.gmra.mxu0 %v326
    %v677 = vpop.f32.mrf.mxu0
    %v678 = vadd.f32 0.0, %v677
    %v679 = vpop.f32.mrf.mxu0
    %v680 = vpop.f32.mrf.mxu0
    %v681 = vadd.f32 0.0, %v680
    %v682 = vpop.f32.mrf.mxu0
    %683 = vmatprep.mubr.bf16.mxu0 %v329
    %684 = vmatmul.mubr.bf16.gmra.mxu0 %v328
    %v685 = vpop.f32.mrf.mxu0
    %v686 = vadd.f32 0.0, %v685
    %v687 = vpop.f32.mrf.mxu0
    %v688 = vpop.f32.mrf.mxu0
    %v689 = vadd.f32 0.0, %v688
    %v690 = vpop.f32.mrf.mxu0
    %691 = vmatprep.mubr.bf16.mxu0 %v331
    %692 = vmatmul.mubr.bf16.gmra.mxu0 %v330
    %v693 = vpop.f32.mrf.mxu0
    %v694 = vadd.f32 0.0, %v693
    %v695 = vpop.f32.mrf.mxu0
    %v696 = vpop.f32.mrf.mxu0
    %v697 = vadd.f32 0.0, %v696
    %v698 = vpop.f32.mrf.mxu0
    %699 = vmatprep.mubr.bf16.mxu0 %v333
    %700 = vmatmul.mubr.bf16.gmra.mxu0 %v332
    %v701 = vpop.f32.mrf.mxu0
    %v702 = vadd.f32 0.0, %v701
    %v703 = vpop.f32.mrf.mxu0
    %v704 = vpop.f32.mrf.mxu0
    %v705 = vadd.f32 0.0, %v704
    %v706 = vpop.f32.mrf.mxu0
    %707 = vmatprep.mubr.bf16.mxu0 %v335
    %708 = vmatmul.mubr.bf16.gmra.mxu0 %v334
    %v709 = vpop.f32.mrf.mxu0
    %v710 = vadd.f32 0.0, %v709
    %v711 = vpop.f32.mrf.mxu0
    %v712 = vpop.f32.mrf.mxu0
    %v713 = vadd.f32 0.0, %v712
    %v714 = vpop.f32.mrf.mxu0
    %715 = vmatprep.mubr.bf16.mxu0 %v337
    %716 = vmatmul.mubr.bf16.gmra.mxu0 %v336
    %v717 = vpop.f32.mrf.mxu0
    %v718 = vadd.f32 0.0, %v717
    %v719 = vpop.f32.mrf.mxu0
    %v720 = vpop.f32.mrf.mxu0
    %v721 = vadd.f32 0.0, %v720
    %v722 = vpop.f32.mrf.mxu0
    %723 = vmatprep.mubr.bf16.mxu0 %v339
    %724 = vmatmul.mubr.bf16.gmra.mxu0 %v338
    %v725 = vpop.f32.mrf.mxu0
    %v726 = vadd.f32 0.0, %v725
    %v727 = vpop.f32.mrf.mxu0
    %v728 = vpop.f32.mrf.mxu0
    %v729 = vadd.f32 0.0, %v728
    %v730 = vpop.f32.mrf.mxu0
    %731 = vmatprep.mubr.bf16.mxu0 %v341
    %732 = vmatmul.mubr.bf16.gmra.mxu0 %v340
    %v733 = vpop.f32.mrf.mxu0
    %v734 = vadd.f32 0.0, %v733
    %v735 = vpop.f32.mrf.mxu0
    %v736 = vpop.f32.mrf.mxu0
    %v737 = vadd.f32 0.0, %v736
    %v738 = vpop.f32.mrf.mxu0
    %739 = vmatprep.mubr.bf16.mxu0 %v343
    %740 = vmatmul.mubr.bf16.gmra.mxu0 %v342
    %v741 = vpop.f32.mrf.mxu0
    %v742 = vadd.f32 0.0, %v741
    %v743 = vpop.f32.mrf.mxu0
    %v744 = vpop.f32.mrf.mxu0
    %v745 = vadd.f32 0.0, %v744
    %v746 = vpop.f32.mrf.mxu0
    %747 = vmatprep.mubr.bf16.mxu0 %v345
    %748 = vmatmul.mubr.bf16.gmra.mxu0 %v344
    %v749 = vpop.f32.mrf.mxu0
    %v750 = vadd.f32 0.0, %v749
    %v751 = vpop.f32.mrf.mxu0
    %v752 = vpop.f32.mrf.mxu0
    %v753 = vadd.f32 0.0, %v752
    %v754 = vpop.f32.mrf.mxu0
    %755 = vmatprep.mubr.bf16.mxu0 %v347
    %756 = vmatmul.mubr.bf16.gmra.mxu0 %v346
    %v757 = vpop.f32.mrf.mxu0
    %v758 = vadd.f32 0.0, %v757
    %v759 = vpop.f32.mrf.mxu0
    %v760 = vpop.f32.mrf.mxu0
    %v761 = vadd.f32 0.0, %v760
    %v762 = vpop.f32.mrf.mxu0
    %763 = vmatprep.mubr.bf16.mxu0 %v349
    %764 = vmatmul.mubr.bf16.gmra.mxu0 %v348
    %v765 = vpop.f32.mrf.mxu0
    %v766 = vadd.f32 0.0, %v765
    %v767 = vpop.f32.mrf.mxu0
    %v768 = vpop.f32.mrf.mxu0
    %v769 = vadd.f32 0.0, %v768
    %v770 = vpop.f32.mrf.mxu0
    %771 = vmatprep.mubr.bf16.mxu0 %v351
    %772 = vmatmul.mubr.bf16.gmra.mxu0 %v350
    %v773 = vpop.f32.mrf.mxu0
    %v774 = vadd.f32 0.0, %v773
    %v775 = vpop.f32.mrf.mxu0
    %v776 = vpop.f32.mrf.mxu0
    %v777 = vadd.f32 0.0, %v776
    %v778 = vpop.f32.mrf.mxu0
    %779 = vmatprep.mubr.bf16.mxu0 %v353
    %780 = vmatmul.mubr.bf16.gmra.mxu0 %v352
    %v781 = vpop.f32.mrf.mxu0
    %v782 = vadd.f32 0.0, %v781
    %v783 = vpop.f32.mrf.mxu0
    %v784 = vpop.f32.mrf.mxu0
    %v785 = vadd.f32 0.0, %v784
    %v786 = vpop.f32.mrf.mxu0
    %787 = vdwg.mxu0
    %v788 = vmul.f32 %v662, 0.3
    %v789 = vmul.f32 %v665, 0.3
    %v790 = vmul.f32 %v670, 0.3
    %v791 = vmul.f32 %v673, 0.3
    %v792 = vmul.f32 %v678, 0.3
    %v793 = vmul.f32 %v681, 0.3
    %v794 = vmul.f32 %v686, 0.3
    %v795 = vmul.f32 %v689, 0.3
    %v796 = vmul.f32 %v694, 0.3
    %v797 = vmul.f32 %v697, 0.3
    %v798 = vmul.f32 %v702, 0.3
    %v799 = vmul.f32 %v705, 0.3
    %v800 = vmul.f32 %v710, 0.3
    %v801 = vmul.f32 %v713, 0.3
    %v802 = vmul.f32 %v718, 0.3
    %v803 = vmul.f32 %v721, 0.3
    %v804 = vmul.f32 %v726, 0.3
    %v805 = vmul.f32 %v729, 0.3
    %v806 = vmul.f32 %v734, 0.3
    %v807 = vmul.f32 %v737, 0.3
    %v808 = vmul.f32 %v742, 0.3
    %v809 = vmul.f32 %v745, 0.3
    %v810 = vmul.f32 %v750, 0.3
    %v811 = vmul.f32 %v753, 0.3
    %v812 = vmul.f32 %v758, 0.3
    %v813 = vmul.f32 %v761, 0.3
    %v814 = vmul.f32 %v766, 0.3
    %v815 = vmul.f32 %v769, 0.3
    %v816 = vmul.f32 %v774, 0.3
    %v817 = vmul.f32 %v777, 0.3
    %v818 = vmul.f32 %v782, 0.3
    %v819 = vmul.f32 %v785, 0.3
    %v820 = vadd.f32 %v579, %v788
    %v821 = vadd.f32 %v580, %v789
    %v822 = vadd.f32 %v581, %v790
    %v823 = vadd.f32 %v582, %v791
    %v824 = vadd.f32 %v583, %v792
    %v825 = vadd.f32 %v584, %v793
    %v826 = vadd.f32 %v585, %v794
    %v827 = vadd.f32 %v586, %v795
    %v828 = vadd.f32 %v587, %v796
    %v829 = vadd.f32 %v588, %v797
    %v830 = vadd.f32 %v589, %v798
    %v831 = vadd.f32 %v590, %v799
    %v832 = vadd.f32 %v591, %v800
    %v833 = vadd.f32 %v592, %v801
    %v834 = vadd.f32 %v593, %v802
    %v835 = vadd.f32 %v594, %v803
    %v836 = vadd.f32 %v595, %v804
    %v837 = vadd.f32 %v596, %v805
    %v838 = vadd.f32 %v597, %v806
    %v839 = vadd.f32 %v598, %v807
    %v840 = vadd.f32 %v599, %v808
    %v841 = vadd.f32 %v600, %v809
    %v842 = vadd.f32 %v601, %v810
    %v843 = vadd.f32 %v602, %v811
    %v844 = vadd.f32 %v603, %v812
    %v845 = vadd.f32 %v604, %v813
    %v846 = vadd.f32 %v605, %v814
    %v847 = vadd.f32 %v606, %v815
    %v848 = vadd.f32 %v607, %v816
    %v849 = vadd.f32 %v608, %v817
    %v850 = vadd.f32 %v609, %v818
    %v851 = vadd.f32 %v610, %v819
    %v852 = vpack.c.bf16 %v665, %v662
    %v853 = vpack.c.bf16 %v673, %v670
    %v854 = vpack.c.bf16 %v681, %v678
    %v855 = vpack.c.bf16 %v689, %v686
    %v856 = vpack.c.bf16 %v697, %v694
    %v857 = vpack.c.bf16 %v705, %v702
    %v858 = vpack.c.bf16 %v713, %v710
    %v859 = vpack.c.bf16 %v721, %v718
    %v860 = vpack.c.bf16 %v729, %v726
    %v861 = vpack.c.bf16 %v737, %v734
    %v862 = vpack.c.bf16 %v745, %v742
    %v863 = vpack.c.bf16 %v753, %v750
    %v864 = vpack.c.bf16 %v761, %v758
    %v865 = vpack.c.bf16 %v769, %v766
    %v866 = vpack.c.bf16 %v777, %v774
    %v867 = vpack.c.bf16 %v785, %v782
    %868 = vmatprep.subr.bf16.mxu0 0
    %869 = vmatpush1.bf16.msra.mxu0 %v859
    %870 = vmatprep.subr.bf16.mxu0 0
    %871 = vmatpush1.bf16.msra.mxu0 %v858
    %872 = vmatprep.subr.bf16.mxu0 0
    %873 = vmatpush1.bf16.msra.mxu0 %v857
    %874 = vmatprep.subr.bf16.mxu0 0
    %875 = vmatpush1.bf16.msra.mxu0 %v856
    %876 = vmatprep.subr.bf16.mxu0 0
    %877 = vmatpush1.bf16.msra.mxu0 %v855
    %878 = vmatprep.subr.bf16.mxu0 0
    %879 = vmatpush1.bf16.msra.mxu0 %v854
    %880 = vmatprep.subr.bf16.mxu0 0
    %881 = vmatpush1.bf16.msra.mxu0 %v853
    %882 = vmatprep.subr.bf16.mxu0 0
    %883 = vmatpush1.bf16.msra.mxu0 %v852
    %884 = vmatprep.subr.bf16.mxu0 0
    %885 = vmatpush2.bf16.msra.mxu0 %v867
    %886 = vmatprep.subr.bf16.mxu0 0
    %887 = vmatpush2.bf16.msra.mxu0 %v866
    %888 = vmatprep.subr.bf16.mxu0 0
    %889 = vmatpush2.bf16.msra.mxu0 %v865
    %890 = vmatprep.subr.bf16.mxu0 0
    %891 = vmatpush2.bf16.msra.mxu0 %v864
    %892 = vmatprep.subr.bf16.mxu0 0
    %893 = vmatpush2.bf16.msra.mxu0 %v863
    %894 = vmatprep.subr.bf16.mxu0 0
    %895 = vmatpush2.bf16.msra.mxu0 %v862
    %896 = vmatprep.subr.bf16.mxu0 0
    %897 = vmatpush2.bf16.msra.mxu0 %v861
    %898 = vmatprep.subr.bf16.mxu0 0
    %899 = vmatpush2.bf16.msra.mxu0 %v860
    %900 = vmatprep.mubr.bf16.mxu0 %v323
    %901 = vmatmul.mubr.bf16.gmra.mxu0 %v322
    %v902 = vpop.f32.mrf.mxu0
    %v903 = vadd.f32 0.0, %v902
    %v904 = vpop.f32.mrf.mxu0
    %v905 = vpop.f32.mrf.mxu0
    %v906 = vadd.f32 0.0, %v905
    %v907 = vpop.f32.mrf.mxu0
    %908 = vmatprep.mubr.bf16.mxu0 %v325
    %909 = vmatmul.mubr.bf16.gmra.mxu0 %v324
    %v910 = vpop.f32.mrf.mxu0
    %v911 = vadd.f32 0.0, %v910
    %v912 = vpop.f32.mrf.mxu0
    %v913 = vpop.f32.mrf.mxu0
    %v914 = vadd.f32 0.0, %v913
    %v915 = vpop.f32.mrf.mxu0
    %916 = vmatprep.mubr.bf16.mxu0 %v327
    %917 = vmatmul.mubr.bf16.gmra.mxu0 %v326
    %v918 = vpop.f32.mrf.mxu0
    %v919 = vadd.f32 0.0, %v918
    %v920 = vpop.f32.mrf.mxu0
    %v921 = vpop.f32.mrf.mxu0
    %v922 = vadd.f32 0.0, %v921
    %v923 = vpop.f32.mrf.mxu0
    %924 = vmatprep.mubr.bf16.mxu0 %v329
    %925 = vmatmul.mubr.bf16.gmra.mxu0 %v328
    %v926 = vpop.f32.mrf.mxu0
    %v927 = vadd.f32 0.0, %v926
    %v928 = vpop.f32.mrf.mxu0
    %v929 = vpop.f32.mrf.mxu0
    %v930 = vadd.f32 0.0, %v929
    %v931 = vpop.f32.mrf.mxu0
    %932 = vmatprep.mubr.bf16.mxu0 %v331
    %933 = vmatmul.mubr.bf16.gmra.mxu0 %v330
    %v934 = vpop.f32.mrf.mxu0
    %v935 = vadd.f32 0.0, %v934
    %v936 = vpop.f32.mrf.mxu0
    %v937 = vpop.f32.mrf.mxu0
    %v938 = vadd.f32 0.0, %v937
    %v939 = vpop.f32.mrf.mxu0
    %940 = vmatprep.mubr.bf16.mxu0 %v333
    %941 = vmatmul.mubr.bf16.gmra.mxu0 %v332
    %v942 = vpop.f32.mrf.mxu0
    %v943 = vadd.f32 0.0, %v942
    %v944 = vpop.f32.mrf.mxu0
    %v945 = vpop.f32.mrf.mxu0
    %v946 = vadd.f32 0.0, %v945
    %v947 = vpop.f32.mrf.mxu0
    %948 = vmatprep.mubr.bf16.mxu0 %v335
    %949 = vmatmul.mubr.bf16.gmra.mxu0 %v334
    %v950 = vpop.f32.mrf.mxu0
    %v951 = vadd.f32 0.0, %v950
    %v952 = vpop.f32.mrf.mxu0
    %v953 = vpop.f32.mrf.mxu0
    %v954 = vadd.f32 0.0, %v953
    %v955 = vpop.f32.mrf.mxu0
    %956 = vmatprep.mubr.bf16.mxu0 %v337
    %957 = vmatmul.mubr.bf16.gmra.mxu0 %v336
    %v958 = vpop.f32.mrf.mxu0
    %v959 = vadd.f32 0.0, %v958
    %v960 = vpop.f32.mrf.mxu0
    %v961 = vpop.f32.mrf.mxu0
    %v962 = vadd.f32 0.0, %v961
    %v963 = vpop.f32.mrf.mxu0
    %964 = vmatprep.mubr.bf16.mxu0 %v339
    %965 = vmatmul.mubr.bf16.gmra.mxu0 %v338
    %v966 = vpop.f32.mrf.mxu0
    %v967 = vadd.f32 0.0, %v966
    %v968 = vpop.f32.mrf.mxu0
    %v969 = vpop.f32.mrf.mxu0
    %v970 = vadd.f32 0.0, %v969
    %v971 = vpop.f32.mrf.mxu0
    %972 = vmatprep.mubr.bf16.mxu0 %v341
    %973 = vmatmul.mubr.bf16.gmra.mxu0 %v340
    %v974 = vpop.f32.mrf.mxu0
    %v975 = vadd.f32 0.0, %v974
    %v976 = vpop.f32.mrf.mxu0
    %v977 = vpop.f32.mrf.mxu0
    %v978 = vadd.f32 0.0, %v977
    %v979 = vpop.f32.mrf.mxu0
    %980 = vmatprep.mubr.bf16.mxu0 %v343
    %981 = vmatmul.mubr.bf16.gmra.mxu0 %v342
    %v982 = vpop.f32.mrf.mxu0
    %v983 = vadd.f32 0.0, %v982
    %v984 = vpop.f32.mrf.mxu0
    %v985 = vpop.f32.mrf.mxu0
    %v986 = vadd.f32 0.0, %v985
    %v987 = vpop.f32.mrf.mxu0
    %988 = vmatprep.mubr.bf16.mxu0 %v345
    %989 = vmatmul.mubr.bf16.gmra.mxu0 %v344
    %v990 = vpop.f32.mrf.mxu0
    %v991 = vadd.f32 0.0, %v990
    %v992 = vpop.f32.mrf.mxu0
    %v993 = vpop.f32.mrf.mxu0
    %v994 = vadd.f32 0.0, %v993
    %v995 = vpop.f32.mrf.mxu0
    %996 = vmatprep.mubr.bf16.mxu0 %v347
    %997 = vmatmul.mubr.bf16.gmra.mxu0 %v346
    %v998 = vpop.f32.mrf.mxu0
    %v999 = vadd.f32 0.0, %v998
    %v1000 = vpop.f32.mrf.mxu0
    %v1001 = vpop.f32.mrf.mxu0
    %v1002 = vadd.f32 0.0, %v1001
    %v1003 = vpop.f32.mrf.mxu0
    %1004 = vmatprep.mubr.bf16.mxu0 %v349
    %1005 = vmatmul.mubr.bf16.gmra.mxu0 %v348
    %v1006 = vpop.f32.mrf.mxu0
    %v1007 = vadd.f32 0.0, %v1006
    %v1008 = vpop.f32.mrf.mxu0
    %v1009 = vpop.f32.mrf.mxu0
    %v1010 = vadd.f32 0.0, %v1009
    %v1011 = vpop.f32.mrf.mxu0
    %1012 = vmatprep.mubr.bf16.mxu0 %v351
    %1013 = vmatmul.mubr.bf16.gmra.mxu0 %v350
    %v1014 = vpop.f32.mrf.mxu0
    %v1015 = vadd.f32 0.0, %v1014
    %v1016 = vpop.f32.mrf.mxu0
    %v1017 = vpop.f32.mrf.mxu0
    %v1018 = vadd.f32 0.0, %v1017
    %v1019 = vpop.f32.mrf.mxu0
    %1020 = vmatprep.mubr.bf16.mxu0 %v353
    %1021 = vmatmul.mubr.bf16.gmra.mxu0 %v352
    %v1022 = vpop.f32.mrf.mxu0
    %v1023 = vadd.f32 0.0, %v1022
    %v1024 = vpop.f32.mrf.mxu0
    %v1025 = vpop.f32.mrf.mxu0
    %v1026 = vadd.f32 0.0, %v1025
    %v1027 = vpop.f32.mrf.mxu0
    %1028 = vdwg.mxu0
    %v1029 = vmul.f32 %v903, 0.3
    %v1030 = vmul.f32 %v906, 0.3
    %v1031 = vmul.f32 %v911, 0.3
    %v1032 = vmul.f32 %v914, 0.3
    %v1033 = vmul.f32 %v919, 0.3
    %v1034 = vmul.f32 %v922, 0.3
    %v1035 = vmul.f32 %v927, 0.3
    %v1036 = vmul.f32 %v930, 0.3
    %v1037 = vmul.f32 %v935, 0.3
    %v1038 = vmul.f32 %v938, 0.3
    %v1039 = vmul.f32 %v943, 0.3
    %v1040 = vmul.f32 %v946, 0.3
    %v1041 = vmul.f32 %v951, 0.3
    %v1042 = vmul.f32 %v954, 0.3
    %v1043 = vmul.f32 %v959, 0.3
    %v1044 = vmul.f32 %v962, 0.3
    %v1045 = vmul.f32 %v967, 0.3
    %v1046 = vmul.f32 %v970, 0.3
    %v1047 = vmul.f32 %v975, 0.3
    %v1048 = vmul.f32 %v978, 0.3
    %v1049 = vmul.f32 %v983, 0.3
    %v1050 = vmul.f32 %v986, 0.3
    %v1051 = vmul.f32 %v991, 0.3
    %v1052 = vmul.f32 %v994, 0.3
    %v1053 = vmul.f32 %v999, 0.3
    %v1054 = vmul.f32 %v1002, 0.3
    %v1055 = vmul.f32 %v1007, 0.3
    %v1056 = vmul.f32 %v1010, 0.3
    %v1057 = vmul.f32 %v1015, 0.3
    %v1058 = vmul.f32 %v1018, 0.3
    %v1059 = vmul.f32 %v1023, 0.3
    %v1060 = vmul.f32 %v1026, 0.3
    %v1061 = vadd.f32 %v820, %v1029
    %v1062 = vadd.f32 %v821, %v1030
    %v1063 = vadd.f32 %v822, %v1031
    %v1064 = vadd.f32 %v823, %v1032
    %v1065 = vadd.f32 %v824, %v1033
    %v1066 = vadd.f32 %v825, %v1034
    %v1067 = vadd.f32 %v826, %v1035
    %v1068 = vadd.f32 %v827, %v1036
    %v1069 = vadd.f32 %v828, %v1037
    %v1070 = vadd.f32 %v829, %v1038
    %v1071 = vadd.f32 %v830, %v1039
    %v1072 = vadd.f32 %v831, %v1040
    %v1073 = vadd.f32 %v832, %v1041
    %v1074 = vadd.f32 %v833, %v1042
    %v1075 = vadd.f32 %v834, %v1043
    %v1076 = vadd.f32 %v835, %v1044
    %v1077 = vadd.f32 %v836, %v1045
    %v1078 = vadd.f32 %v837, %v1046
    %v1079 = vadd.f32 %v838, %v1047
    %v1080 = vadd.f32 %v839, %v1048
    %v1081 = vadd.f32 %v840, %v1049
    %v1082 = vadd.f32 %v841, %v1050
    %v1083 = vadd.f32 %v842, %v1051
    %v1084 = vadd.f32 %v843, %v1052
    %v1085 = vadd.f32 %v844, %v1053
    %v1086 = vadd.f32 %v845, %v1054
    %v1087 = vadd.f32 %v846, %v1055
    %v1088 = vadd.f32 %v847, %v1056
    %v1089 = vadd.f32 %v848, %v1057
    %v1090 = vadd.f32 %v849, %v1058
    %v1091 = vadd.f32 %v850, %v1059
    %v1092 = vadd.f32 %v851, %v1060
    %v1093 = vpack.c.bf16 %v1062, %v1061
    %v1094 = vpack.c.bf16 %v1064, %v1063
    %v1095 = vpack.c.bf16 %v1066, %v1065
    %v1096 = vpack.c.bf16 %v1068, %v1067
    %v1097 = vpack.c.bf16 %v1070, %v1069
    %v1098 = vpack.c.bf16 %v1072, %v1071
    %v1099 = vpack.c.bf16 %v1074, %v1073
    %v1100 = vpack.c.bf16 %v1076, %v1075
    %v1101 = vpack.c.bf16 %v1078, %v1077
    %v1102 = vpack.c.bf16 %v1080, %v1079
    %v1103 = vpack.c.bf16 %v1082, %v1081
    %v1104 = vpack.c.bf16 %v1084, %v1083
    %v1105 = vpack.c.bf16 %v1086, %v1085
    %v1106 = vpack.c.bf16 %v1088, %v1087
    %v1107 = vpack.c.bf16 %v1090, %v1089
    %v1108 = vpack.c.bf16 %v1092, %v1091
    %v1109 = vld [vmem:[#allocation8] sm:$0xf]
    %v1110 = vld [vmem:[#allocation8 + $0x4] sm:$0xf]
    %v1111 = vld [vmem:[#allocation8 + $0x8] sm:$0xf]
    %v1112 = vld [vmem:[#allocation8 + $0xc] sm:$0xf]
    %v1113 = vld [vmem:[#allocation8 + $0x10] sm:$0xf]
    %v1114 = vld [vmem:[#allocation8 + $0x14] sm:$0xf]
    %v1115 = vld [vmem:[#allocation8 + $0x18] sm:$0xf]
    %v1116 = vld [vmem:[#allocation8 + $0x1c] sm:$0xf]
    %v1117 = vld [vmem:[#allocation8 + $0x20] sm:$0xf]
    %v1118 = vld [vmem:[#allocation8 + $0x24] sm:$0xf]
    %v1119 = vld [vmem:[#allocation8 + $0x28] sm:$0xf]
    %v1120 = vld [vmem:[#allocation8 + $0x2c] sm:$0xf]
    %v1121 = vld [vmem:[#allocation8 + $0x30] sm:$0xf]
    %v1122 = vld [vmem:[#allocation8 + $0x34] sm:$0xf]
    %v1123 = vld [vmem:[#allocation8 + $0x38] sm:$0xf]
    %v1124 = vld [vmem:[#allocation8 + $0x3c] sm:$0xf]
    %v1125 = vld [vmem:[%s4] sm:$0x1]
    %v1127 = vlaneseq
    %v1128 = vshrl.u32 %v1127, 7
    %v1129 = vsub.s32 0, %v1128
    %v1130 = vrot.slane %v1125, %v1129
    %v1148 = vunpack.c.l.b16 %v1109
    %v1149 = vunpack.c.l.b16 %v1110
    %v1150 = vunpack.c.l.b16 %v1111
    %v1151 = vunpack.c.l.b16 %v1112
    %v1152 = vunpack.c.l.b16 %v1113
    %v1153 = vunpack.c.l.b16 %v1114
    %v1154 = vunpack.c.l.b16 %v1115
    %v1155 = vunpack.c.l.b16 %v1116
    %v1156 = vunpack.c.l.b16 %v1117
    %v1157 = vunpack.c.l.b16 %v1118
    %v1158 = vunpack.c.l.b16 %v1119
    %v1159 = vunpack.c.l.b16 %v1120
    %v1160 = vunpack.c.l.b16 %v1121
    %v1161 = vunpack.c.l.b16 %v1122
    %v1162 = vunpack.c.l.b16 %v1123
    %v1163 = vunpack.c.l.b16 %v1124
    %v1164 = vpack.c.b16 %v1149, %v1148
    %v1165 = vpack.c.b16 %v1151, %v1150
    %v1166 = vpack.c.b16 %v1153, %v1152
    %v1167 = vpack.c.b16 %v1155, %v1154
    %v1168 = vpack.c.b16 %v1157, %v1156
    %v1169 = vpack.c.b16 %v1159, %v1158
    %v1170 = vpack.c.b16 %v1161, %v1160
    %v1171 = vpack.c.b16 %v1163, %v1162
    %1180 = vmatprep.subr.bf16.mxu0 0
    %1181 = vmatpush1.bf16.msra.mxu0 %v1171
    %1182 = vmatprep.subr.bf16.mxu0 0
    %1183 = vmatpush1.bf16.msra.mxu0 %v1170
    %1184 = vmatprep.subr.bf16.mxu0 0
    %1185 = vmatpush1.bf16.msra.mxu0 %v1169
    %1186 = vmatprep.subr.bf16.mxu0 0
    %1187 = vmatpush1.bf16.msra.mxu0 %v1168
    %1188 = vmatprep.subr.bf16.mxu0 0
    %1189 = vmatpush1.bf16.msra.mxu0 %v1167
    %1190 = vmatprep.subr.bf16.mxu0 0
    %1191 = vmatpush1.bf16.msra.mxu0 %v1166
    %1192 = vmatprep.subr.bf16.mxu0 0
    %1193 = vmatpush1.bf16.msra.mxu0 %v1165
    %1194 = vmatprep.subr.bf16.mxu0 0
    %1195 = vmatpush1.bf16.msra.mxu0 %v1164
    %1196 = vmatprep.subr.bf16.mxu0 0
    %1197 = vmatpush2.bf16.msra.mxu0 0
    %1198 = vmatprep.subr.bf16.mxu0 0
    %1199 = vmatpush2.bf16.msra.mxu0 0
    %1200 = vmatprep.subr.bf16.mxu0 0
    %1201 = vmatpush2.bf16.msra.mxu0 0
    %1202 = vmatprep.subr.bf16.mxu0 0
    %1203 = vmatpush2.bf16.msra.mxu0 0
    %1204 = vmatprep.subr.bf16.mxu0 0
    %1205 = vmatpush2.bf16.msra.mxu0 0
    %1206 = vmatprep.subr.bf16.mxu0 0
    %1207 = vmatpush2.bf16.msra.mxu0 0
    %1208 = vmatprep.subr.bf16.mxu0 0
    %1209 = vmatpush2.bf16.msra.mxu0 0
    %1210 = vmatprep.subr.bf16.mxu0 0
    %1211 = vmatpush2.bf16.msra.mxu0 0
    %1212 = vmatprep.mubr.bf16.mxu0 0
    %1213 = vmatmul.mubr.bf16.gmra.mxu0 %v1093
    %v1214 = vpop.f32.mrf.mxu0
    %v1215 = vadd.f32 %v1130, %v1214
    %v1216 = vpop.f32.mrf.mxu0
    %v1217 = vpop.f32.mrf.mxu0
    %v1218 = vadd.f32 %v1130, %v1217
    %v1219 = vpop.f32.mrf.mxu0
    %1220 = vmatprep.mubr.bf16.mxu0 0
    %1221 = vmatmul.mubr.bf16.gmra.mxu0 %v1094
    %v1222 = vpop.f32.mrf.mxu0
    %v1223 = vadd.f32 %v1130, %v1222
    %v1224 = vpop.f32.mrf.mxu0
    %v1225 = vpop.f32.mrf.mxu0
    %v1226 = vadd.f32 %v1130, %v1225
    %v1227 = vpop.f32.mrf.mxu0
    %1228 = vmatprep.mubr.bf16.mxu0 0
    %1229 = vmatmul.mubr.bf16.gmra.mxu0 %v1095
    %v1230 = vpop.f32.mrf.mxu0
    %v1231 = vadd.f32 %v1130, %v1230
    %v1232 = vpop.f32.mrf.mxu0
    %v1233 = vpop.f32.mrf.mxu0
    %v1234 = vadd.f32 %v1130, %v1233
    %v1235 = vpop.f32.mrf.mxu0
    %1236 = vmatprep.mubr.bf16.mxu0 0
    %1237 = vmatmul.mubr.bf16.gmra.mxu0 %v1096
    %v1238 = vpop.f32.mrf.mxu0
    %v1239 = vadd.f32 %v1130, %v1238
    %v1240 = vpop.f32.mrf.mxu0
    %v1241 = vpop.f32.mrf.mxu0
    %v1242 = vadd.f32 %v1130, %v1241
    %v1243 = vpop.f32.mrf.mxu0
    %1244 = vmatprep.mubr.bf16.mxu0 0
    %1245 = vmatmul.mubr.bf16.gmra.mxu0 %v1097
    %v1246 = vpop.f32.mrf.mxu0
    %v1247 = vadd.f32 %v1130, %v1246
    %v1248 = vpop.f32.mrf.mxu0
    %v1249 = vpop.f32.mrf.mxu0
    %v1250 = vadd.f32 %v1130, %v1249
    %v1251 = vpop.f32.mrf.mxu0
    %1252 = vmatprep.mubr.bf16.mxu0 0
    %1253 = vmatmul.mubr.bf16.gmra.mxu0 %v1098
    %v1254 = vpop.f32.mrf.mxu0
    %v1255 = vadd.f32 %v1130, %v1254
    %v1256 = vpop.f32.mrf.mxu0
    %v1257 = vpop.f32.mrf.mxu0
    %v1258 = vadd.f32 %v1130, %v1257
    %v1259 = vpop.f32.mrf.mxu0
    %1260 = vmatprep.mubr.bf16.mxu0 0
    %1261 = vmatmul.mubr.bf16.gmra.mxu0 %v1099
    %v1262 = vpop.f32.mrf.mxu0
    %v1263 = vadd.f32 %v1130, %v1262
    %v1264 = vpop.f32.mrf.mxu0
    %v1265 = vpop.f32.mrf.mxu0
    %v1266 = vadd.f32 %v1130, %v1265
    %v1267 = vpop.f32.mrf.mxu0
    %1268 = vmatprep.mubr.bf16.mxu0 0
    %1269 = vmatmul.mubr.bf16.gmra.mxu0 %v1100
    %v1270 = vpop.f32.mrf.mxu0
    %v1271 = vadd.f32 %v1130, %v1270
    %v1272 = vpop.f32.mrf.mxu0
    %v1273 = vpop.f32.mrf.mxu0
    %v1274 = vadd.f32 %v1130, %v1273
    %v1275 = vpop.f32.mrf.mxu0
    %1276 = vmatprep.mubr.bf16.mxu0 0
    %1277 = vmatmul.mubr.bf16.gmra.mxu0 %v1101
    %v1278 = vpop.f32.mrf.mxu0
    %v1279 = vadd.f32 %v1130, %v1278
    %v1280 = vpop.f32.mrf.mxu0
    %v1281 = vpop.f32.mrf.mxu0
    %v1282 = vadd.f32 %v1130, %v1281
    %v1283 = vpop.f32.mrf.mxu0
    %1284 = vmatprep.mubr.bf16.mxu0 0
    %1285 = vmatmul.mubr.bf16.gmra.mxu0 %v1102
    %v1286 = vpop.f32.mrf.mxu0
    %v1287 = vadd.f32 %v1130, %v1286
    %v1288 = vpop.f32.mrf.mxu0
    %v1289 = vpop.f32.mrf.mxu0
    %v1290 = vadd.f32 %v1130, %v1289
    %v1291 = vpop.f32.mrf.mxu0
    %1292 = vmatprep.mubr.bf16.mxu0 0
    %1293 = vmatmul.mubr.bf16.gmra.mxu0 %v1103
    %v1294 = vpop.f32.mrf.mxu0
    %v1295 = vadd.f32 %v1130, %v1294
    %v1296 = vpop.f32.mrf.mxu0
    %v1297 = vpop.f32.mrf.mxu0
    %v1298 = vadd.f32 %v1130, %v1297
    %v1299 = vpop.f32.mrf.mxu0
    %1300 = vmatprep.mubr.bf16.mxu0 0
    %1301 = vmatmul.mubr.bf16.gmra.mxu0 %v1104
    %v1302 = vpop.f32.mrf.mxu0
    %v1303 = vadd.f32 %v1130, %v1302
    %v1304 = vpop.f32.mrf.mxu0
    %v1305 = vpop.f32.mrf.mxu0
    %v1306 = vadd.f32 %v1130, %v1305
    %v1307 = vpop.f32.mrf.mxu0
    %1308 = vmatprep.mubr.bf16.mxu0 0
    %1309 = vmatmul.mubr.bf16.gmra.mxu0 %v1105
    %v1310 = vpop.f32.mrf.mxu0
    %v1311 = vadd.f32 %v1130, %v1310
    %v1312 = vpop.f32.mrf.mxu0
    %v1313 = vpop.f32.mrf.mxu0
    %v1314 = vadd.f32 %v1130, %v1313
    %v1315 = vpop.f32.mrf.mxu0
    %1316 = vmatprep.mubr.bf16.mxu0 0
    %1317 = vmatmul.mubr.bf16.gmra.mxu0 %v1106
    %v1318 = vpop.f32.mrf.mxu0
    %v1319 = vadd.f32 %v1130, %v1318
    %v1320 = vpop.f32.mrf.mxu0
    %v1321 = vpop.f32.mrf.mxu0
    %v1322 = vadd.f32 %v1130, %v1321
    %v1323 = vpop.f32.mrf.mxu0
    %1324 = vmatprep.mubr.bf16.mxu0 0
    %1325 = vmatmul.mubr.bf16.gmra.mxu0 %v1107
    %v1326 = vpop.f32.mrf.mxu0
    %v1327 = vadd.f32 %v1130, %v1326
    %v1328 = vpop.f32.mrf.mxu0
    %v1329 = vpop.f32.mrf.mxu0
    %v1330 = vadd.f32 %v1130, %v1329
    %v1331 = vpop.f32.mrf.mxu0
    %1332 = vmatprep.mubr.bf16.mxu0 0
    %1333 = vmatmul.mubr.bf16.gmra.mxu0 %v1108
    %v1334 = vpop.f32.mrf.mxu0
    %v1335 = vadd.f32 %v1130, %v1334
    %v1336 = vpop.f32.mrf.mxu0
    %v1337 = vpop.f32.mrf.mxu0
    %v1338 = vadd.f32 %v1130, %v1337
    %v1339 = vpop.f32.mrf.mxu0
    %1340 = vdwg.mxu0
    %v1341 = vld [vmem:[#allocation7] sm:$0xff]
    %v1342 = vpack.c.bf16 %v1218, %v1215
    %v1343 = vpack.c.bf16 %v1226, %v1223
    %v1344 = vpack.c.bf16 %v1234, %v1231
    %v1345 = vpack.c.bf16 %v1242, %v1239
    %v1346 = vpack.c.bf16 %v1250, %v1247
    %v1347 = vpack.c.bf16 %v1258, %v1255
    %v1348 = vpack.c.bf16 %v1266, %v1263
    %v1349 = vpack.c.bf16 %v1274, %v1271
    %v1350 = vpack.c.bf16 %v1282, %v1279
    %v1351 = vpack.c.bf16 %v1290, %v1287
    %v1352 = vpack.c.bf16 %v1298, %v1295
    %v1353 = vpack.c.bf16 %v1306, %v1303
    %v1354 = vpack.c.bf16 %v1314, %v1311
    %v1355 = vpack.c.bf16 %v1322, %v1319
    %v1356 = vpack.c.bf16 %v1330, %v1327
    %v1357 = vpack.c.bf16 %v1338, %v1335
    %v1359 = vunpack.c.l.b16 %v1341
    %v1360 = vunpack.c.h.b16 %v1341
    %v1361 = vpack.c.b16 %v1359, %v1359
    %v1362 = vpack.c.b16 %v1360, %v1360
    %1365 = vmatprep.subr.bf16.mxu0 0
    %1366 = vmatpush1.bf16.msra.mxu0 %v1349
    %1367 = vmatprep.subr.bf16.mxu0 0
    %1368 = vmatpush1.bf16.msra.mxu0 %v1348
    %1369 = vmatprep.subr.bf16.mxu0 0
    %1370 = vmatpush1.bf16.msra.mxu0 %v1347
    %1371 = vmatprep.subr.bf16.mxu0 0
    %1372 = vmatpush1.bf16.msra.mxu0 %v1346
    %1373 = vmatprep.subr.bf16.mxu0 0
    %1374 = vmatpush1.bf16.msra.mxu0 %v1345
    %1375 = vmatprep.subr.bf16.mxu0 0
    %1376 = vmatpush1.bf16.msra.mxu0 %v1344
    %1377 = vmatprep.subr.bf16.mxu0 0
    %1378 = vmatpush1.bf16.msra.mxu0 %v1343
    %1379 = vmatprep.subr.bf16.mxu0 0
    %1380 = vmatpush1.bf16.msra.mxu0 %v1342
    %1381 = vmatprep.subr.bf16.mxu0 0
    %1382 = vmatpush2.bf16.msra.mxu0 %v1357
    %1383 = vmatprep.subr.bf16.mxu0 0
    %1384 = vmatpush2.bf16.msra.mxu0 %v1356
    %1385 = vmatprep.subr.bf16.mxu0 0
    %1386 = vmatpush2.bf16.msra.mxu0 %v1355
    %1387 = vmatprep.subr.bf16.mxu0 0
    %1388 = vmatpush2.bf16.msra.mxu0 %v1354
    %1389 = vmatprep.subr.bf16.mxu0 0
    %1390 = vmatpush2.bf16.msra.mxu0 %v1353
    %1391 = vmatprep.subr.bf16.mxu0 0
    %1392 = vmatpush2.bf16.msra.mxu0 %v1352
    %1393 = vmatprep.subr.bf16.mxu0 0
    %1394 = vmatpush2.bf16.msra.mxu0 %v1351
    %1395 = vmatprep.subr.bf16.mxu0 0
    %1396 = vmatpush2.bf16.msra.mxu0 %v1350
    %1397 = vmatprep.mubr.bf16.mxu0 %v1362
    %1398 = vmatmul.mubr.bf16.gmra.mxu0 %v1361
    %v1399 = vpop.f32.mrf.mxu0
    %v1400 = vadd.f32 0.0, %v1399
    %v1401 = vpop.f32.mrf.mxu0
    %v1402 = vpop.f32.mrf.mxu0
    %v1403 = vpop.f32.mrf.mxu0
    %1404 = vdwg.mxu0
    %v1405 = vpack.c.bf16 %v1400, %v1400
    %v1406 = vld [vmem:[#allocation10] sm:$0xf]
    %v1407 = vld [vmem:[#allocation10 + $0x4] sm:$0xf]
    %v1408 = vld [vmem:[#allocation10 + $0x8] sm:$0xf]
    %v1409 = vld [vmem:[#allocation10 + $0xc] sm:$0xf]
    %v1410 = vld [vmem:[#allocation10 + $0x10] sm:$0xf]
    %v1411 = vld [vmem:[#allocation10 + $0x14] sm:$0xf]
    %v1412 = vld [vmem:[#allocation10 + $0x18] sm:$0xf]
    %v1413 = vld [vmem:[#allocation10 + $0x1c] sm:$0xf]
    %v1414 = vld [vmem:[#allocation10 + $0x20] sm:$0xf]
    %v1415 = vld [vmem:[#allocation10 + $0x24] sm:$0xf]
    %v1416 = vld [vmem:[#allocation10 + $0x28] sm:$0xf]
    %v1417 = vld [vmem:[#allocation10 + $0x2c] sm:$0xf]
    %v1418 = vld [vmem:[#allocation10 + $0x30] sm:$0xf]
    %v1419 = vld [vmem:[#allocation10 + $0x34] sm:$0xf]
    %v1420 = vld [vmem:[#allocation10 + $0x38] sm:$0xf]
    %v1421 = vld [vmem:[#allocation10 + $0x3c] sm:$0xf]
    %v1422 = vld [vmem:[%s6] sm:$0x1]
    %v1424 = vlaneseq
    %v1425 = vshrl.u32 %v1424, 7
    %v1426 = vsub.s32 0, %v1425
    %v1427 = vrot.slane %v1422, %v1426
    %v1445 = vunpack.c.l.b16 %v1406
    %v1446 = vunpack.c.l.b16 %v1407
    %v1447 = vunpack.c.l.b16 %v1408
    %v1448 = vunpack.c.l.b16 %v1409
    %v1449 = vunpack.c.l.b16 %v1410
    %v1450 = vunpack.c.l.b16 %v1411
    %v1451 = vunpack.c.l.b16 %v1412
    %v1452 = vunpack.c.l.b16 %v1413
    %v1453 = vunpack.c.l.b16 %v1414
    %v1454 = vunpack.c.l.b16 %v1415
    %v1455 = vunpack.c.l.b16 %v1416
    %v1456 = vunpack.c.l.b16 %v1417
    %v1457 = vunpack.c.l.b16 %v1418
    %v1458 = vunpack.c.l.b16 %v1419
    %v1459 = vunpack.c.l.b16 %v1420
    %v1460 = vunpack.c.l.b16 %v1421
    %v1461 = vpack.c.b16 %v1446, %v1445
    %v1462 = vpack.c.b16 %v1448, %v1447
    %v1463 = vpack.c.b16 %v1450, %v1449
    %v1464 = vpack.c.b16 %v1452, %v1451
    %v1465 = vpack.c.b16 %v1454, %v1453
    %v1466 = vpack.c.b16 %v1456, %v1455
    %v1467 = vpack.c.b16 %v1458, %v1457
    %v1468 = vpack.c.b16 %v1460, %v1459
    %1477 = vmatprep.subr.bf16.mxu0 0
    %1478 = vmatpush1.bf16.msra.mxu0 %v1468
    %1479 = vmatprep.subr.bf16.mxu0 0
    %1480 = vmatpush1.bf16.msra.mxu0 %v1467
    %1481 = vmatprep.subr.bf16.mxu0 0
    %1482 = vmatpush1.bf16.msra.mxu0 %v1466
    %1483 = vmatprep.subr.bf16.mxu0 0
    %1484 = vmatpush1.bf16.msra.mxu0 %v1465
    %1485 = vmatprep.subr.bf16.mxu0 0
    %1486 = vmatpush1.bf16.msra.mxu0 %v1464
    %1487 = vmatprep.subr.bf16.mxu0 0
    %1488 = vmatpush1.bf16.msra.mxu0 %v1463
    %1489 = vmatprep.subr.bf16.mxu0 0
    %1490 = vmatpush1.bf16.msra.mxu0 %v1462
    %1491 = vmatprep.subr.bf16.mxu0 0
    %1492 = vmatpush1.bf16.msra.mxu0 %v1461
    %1493 = vmatprep.subr.bf16.mxu0 0
    %1494 = vmatpush2.bf16.msra.mxu0 0
    %1495 = vmatprep.subr.bf16.mxu0 0
    %1496 = vmatpush2.bf16.msra.mxu0 0
    %1497 = vmatprep.subr.bf16.mxu0 0
    %1498 = vmatpush2.bf16.msra.mxu0 0
    %1499 = vmatprep.subr.bf16.mxu0 0
    %1500 = vmatpush2.bf16.msra.mxu0 0
    %1501 = vmatprep.subr.bf16.mxu0 0
    %1502 = vmatpush2.bf16.msra.mxu0 0
    %1503 = vmatprep.subr.bf16.mxu0 0
    %1504 = vmatpush2.bf16.msra.mxu0 0
    %1505 = vmatprep.subr.bf16.mxu0 0
    %1506 = vmatpush2.bf16.msra.mxu0 0
    %1507 = vmatprep.subr.bf16.mxu0 0
    %1508 = vmatpush2.bf16.msra.mxu0 0
    %1509 = vmatprep.mubr.bf16.mxu0 0
    %1510 = vmatmul.mubr.bf16.gmra.mxu0 %v1405
    %v1511 = vpop.f32.mrf.mxu0
    %v1512 = vadd.f32 %v1427, %v1511
    %v1513 = vpop.f32.mrf.mxu0
    %v1514 = vpop.f32.mrf.mxu0
    %v1515 = vpop.f32.mrf.mxu0
    %1516 = vdwg.mxu0
    %v1517 = vmax.f32 %v1512, 0.0
    %v1518 = vpack.c.bf16 %v1517, %v1517
    %v1519 = vld [vmem:[#allocation11] sm:$0xf]
    %v1520 = vld [vmem:[#allocation11 + $0x4] sm:$0xf]
    %v1521 = vld [vmem:[#allocation11 + $0x8] sm:$0xf]
    %v1522 = vld [vmem:[#allocation11 + $0xc] sm:$0xf]
    %v1523 = vld [vmem:[#allocation11 + $0x10] sm:$0xf]
    %v1524 = vld [vmem:[#allocation11 + $0x14] sm:$0xf]
    %v1525 = vld [vmem:[#allocation11 + $0x18] sm:$0xf]
    %v1526 = vld [vmem:[#allocation11 + $0x1c] sm:$0xf]
    %v1527 = vld [vmem:[#allocation11 + $0x20] sm:$0xf]
    %v1528 = vld [vmem:[#allocation11 + $0x24] sm:$0xf]
    %v1529 = vld [vmem:[#allocation11 + $0x28] sm:$0xf]
    %v1530 = vld [vmem:[#allocation11 + $0x2c] sm:$0xf]
    %v1531 = vld [vmem:[#allocation11 + $0x30] sm:$0xf]
    %v1532 = vld [vmem:[#allocation11 + $0x34] sm:$0xf]
    %v1533 = vld [vmem:[#allocation11 + $0x38] sm:$0xf]
    %v1534 = vld [vmem:[#allocation11 + $0x3c] sm:$0xf]
    %v1535 = vld [vmem:[%s8] sm:$0x1]
    %v1537 = vlaneseq
    %v1538 = vshrl.u32 %v1537, 7
    %v1539 = vsub.s32 0, %v1538
    %v1540 = vrot.slane %v1535, %v1539
    %v1558 = vunpack.c.l.b16 %v1519
    %v1559 = vunpack.c.l.b16 %v1520
    %v1560 = vunpack.c.l.b16 %v1521
    %v1561 = vunpack.c.l.b16 %v1522
    %v1562 = vunpack.c.l.b16 %v1523
    %v1563 = vunpack.c.l.b16 %v1524
    %v1564 = vunpack.c.l.b16 %v1525
    %v1565 = vunpack.c.l.b16 %v1526
    %v1566 = vunpack.c.l.b16 %v1527
    %v1567 = vunpack.c.l.b16 %v1528
    %v1568 = vunpack.c.l.b16 %v1529
    %v1569 = vunpack.c.l.b16 %v1530
    %v1570 = vunpack.c.l.b16 %v1531
    %v1571 = vunpack.c.l.b16 %v1532
    %v1572 = vunpack.c.l.b16 %v1533
    %v1573 = vunpack.c.l.b16 %v1534
    %v1574 = vpack.c.b16 %v1559, %v1558
    %v1575 = vpack.c.b16 %v1561, %v1560
    %v1576 = vpack.c.b16 %v1563, %v1562
    %v1577 = vpack.c.b16 %v1565, %v1564
    %v1578 = vpack.c.b16 %v1567, %v1566
    %v1579 = vpack.c.b16 %v1569, %v1568
    %v1580 = vpack.c.b16 %v1571, %v1570
    %v1581 = vpack.c.b16 %v1573, %v1572
    %1590 = vmatprep.subr.bf16.mxu0 0
    %1591 = vmatpush1.bf16.msra.mxu0 %v1581
    %1592 = vmatprep.subr.bf16.mxu0 0
    %1593 = vmatpush1.bf16.msra.mxu0 %v1580
    %1594 = vmatprep.subr.bf16.mxu0 0
    %1595 = vmatpush1.bf16.msra.mxu0 %v1579
    %1596 = vmatprep.subr.bf16.mxu0 0
    %1597 = vmatpush1.bf16.msra.mxu0 %v1578
    %1598 = vmatprep.subr.bf16.mxu0 0
    %1599 = vmatpush1.bf16.msra.mxu0 %v1577
    %1600 = vmatprep.subr.bf16.mxu0 0
    %1601 = vmatpush1.bf16.msra.mxu0 %v1576
    %1602 = vmatprep.subr.bf16.mxu0 0
    %1603 = vmatpush1.bf16.msra.mxu0 %v1575
    %1604 = vmatprep.subr.bf16.mxu0 0
    %1605 = vmatpush1.bf16.msra.mxu0 %v1574
    %1606 = vmatprep.subr.bf16.mxu0 0
    %1607 = vmatpush2.bf16.msra.mxu0 0
    %1608 = vmatprep.subr.bf16.mxu0 0
    %1609 = vmatpush2.bf16.msra.mxu0 0
    %1610 = vmatprep.subr.bf16.mxu0 0
    %1611 = vmatpush2.bf16.msra.mxu0 0
    %1612 = vmatprep.subr.bf16.mxu0 0
    %1613 = vmatpush2.bf16.msra.mxu0 0
    %1614 = vmatprep.subr.bf16.mxu0 0
    %1615 = vmatpush2.bf16.msra.mxu0 0
    %1616 = vmatprep.subr.bf16.mxu0 0
    %1617 = vmatpush2.bf16.msra.mxu0 0
    %1618 = vmatprep.subr.bf16.mxu0 0
    %1619 = vmatpush2.bf16.msra.mxu0 0
    %1620 = vmatprep.subr.bf16.mxu0 0
    %1621 = vmatpush2.bf16.msra.mxu0 0
    %1622 = vmatprep.mubr.bf16.mxu0 0
    %1623 = vmatmul.mubr.bf16.gmra.mxu0 %v1518
    %v1624 = vpop.f32.mrf.mxu0
    %v1625 = vadd.f32 %v1540, %v1624
    %v1626 = vpop.f32.mrf.mxu0
    %v1627 = vpop.f32.mrf.mxu0
    %v1628 = vpop.f32.mrf.mxu0
    %1629 = vdwg.mxu0
    %v1630 = vlaneseq
    %v1631 = vand.u32 %v1630, 127
    %vm1632 = vcmp.lt.s32.totalorder %v1631, 4
    %v1633 = vsel %vm1632, %v1625, -1e+30
    %1634 = vmax.xlane.f32.xlu0 %v1633
    %v1635 = vpop.xlane.xlu0 %1634
    %v1636 = vsub.f32 %v1633, %v1635
    %v1637 = vmul.f32 %v1636, 1.442695
    %v1638 = vpow.pop %v1637
    %1639 = vadd.xlane.f32.xlu0 %v1638
    %v1640 = vpop.xlane.xlu0 %1639
    %v1641 = vlog2.pop %v1640
    %v1642 = vmul.f32 %v1641, 0.6931472
    %v1643 = vsub.f32 %v1636, %v1642
    %1644 = vst [vmem:[#allocation13] sm:$0xff] %v1643
    // Predicated region
    $region62: #{tpu_custom_call.1} parent=1 // pred_check
      _
    $region63: #{tpu_custom_call.1} parent=1 // pred_check_branch
      %1646 = sbr.rel (0) target = $region65
    $region64: #{tpu_custom_call.1} parent=1 // pred_region
      %s1648 = ssub.s32 128, 128
      %1649 = vsyncadd [#allocation4], %s1648
      %s1651 = sshll.u32 [#allocation13], 4
      %s1652 = int_to_ptr.vmem [resolvable:$true] %s1651
      %1654 = dma.vmem_to_hbm [thread:$0]  %s1652, 128, %s9, [#allocation4]
    $region65: #{tpu_custom_call.1} parent=1 // pred_fallthru
      _
    // Predicated region
    $region66: #{tpu_custom_call.1} parent=1 // pred_check
      _
    $region67: #{tpu_custom_call.1} parent=1 // pred_check_branch
      %1656 = sbr.rel (0) target = $region69
    $region68: #{tpu_custom_call.1} parent=1 // pred_region
      %1657 = dma.done [#allocation4], 128
    $region69: #{tpu_custom_call.1} parent=1 // pred_fallthru
      _
    %1658 = vsyncpa [#allocation3], 1
    %1659 = vsyncpa [#allocation6], 1
    %1660 = vsyncpa [#allocation9], 1
    %1661 = vsyncpa [#allocation12], 1
    %1662 = vsyncpa [#allocation4], 1

</llo_original>
